<compile_context>
chip_gen: v5e
topology: v5e:2x2
jax: 0.10.0
libtpu: 0.0.40
codegen_flags: <defaults>
</compile_context>

<pallas_src>
import functools

import jax
import jax.numpy as jnp
from jax.experimental import pallas as pl
from jax.experimental.pallas import tpu as pltpu


def _round_up(x: int, m: int) -> int:
    return ((x + m - 1) // m) * m


def _choose_tm(n: int) -> int:
    """Row-tile size: keep >=2 grid steps (v7x dual-TC) but amortize per-step
    overhead on single-TC chips; multiples of 128, clamped to [128, 512]."""
    half = -(-max(n, 1) // 2)            # cdiv(n, 2)
    return max(128, min(_round_up(half, 128), 512))


def prepare_fused_params(w_cls, b_cls, w_bbox, b_bbox):
    """One-time parameter prep (do at weight-load time, NOT per forward).

    w_cls:  (in_dim, C)   == torch W_cls.T
    w_bbox: (in_dim, 4C)  == torch W_bbox.T
    Returns (w_fused_padded bf16 (in_dim, out_pad), b_fused_padded f32
    (1, out_pad), out_c, out_total).
    """
    in_dim, out_c = w_cls.shape
    out_b = w_bbox.shape[1]
    out_total = out_c + out_b                  # 5C
    out_pad = _round_up(out_total, 128)        # lane-dense output width

    w_p = jnp.zeros((in_dim, out_pad), jnp.bfloat16)
    w_p = w_p.at[:, :out_c].set(w_cls.astype(jnp.bfloat16))
    w_p = w_p.at[:, out_c:out_total].set(w_bbox.astype(jnp.bfloat16))

    b_p = jnp.zeros((1, out_pad), jnp.float32)
    b_p = b_p.at[:, :out_c].set(b_cls.astype(jnp.float32).reshape(1, -1))
    b_p = b_p.at[:, out_c:out_total].set(b_bbox.astype(jnp.float32).reshape(1, -1))

    return w_p, b_p, out_c, out_total


def _fused_head_kernel(x_ref, w_ref, b_ref, o_ref):
    # One grid step: (tm, in_dim) f32 row tile, cast to bf16 on the VPU, one
    # MXU pass against the resident fused bf16 weight, f32 accumulation, bias
    # added in f32, stored lane-dense (out_pad is a multiple of 128).
    x_bf = x_ref[...].astype(jnp.bfloat16)
    acc = jnp.dot(x_bf, w_ref[...], preferred_element_type=jnp.float32)
    o_ref[...] = acc + b_ref[...]


@functools.partial(jax.jit, static_argnames=("out_c", "out_total", "tm"))
def two_headed_forward_fused(x, w_fused, b_fused, *, out_c, out_total, tm):
    """x: (N, in_dim) f32/bf16; w_fused: (in_dim, out_pad) bf16;
    b_fused: (1, out_pad) f32. Returns (cls_scores (N, C), bbox_pred (N, 4C))."""
    N, in_dim = x.shape
    out_pad = w_fused.shape[1]

    grid = (pl.cdiv(N, tm),)                     # ragged last tile is fine:
    # input block (tm, in_dim) is (8,128)-aligned; partial output rows are
    # masked on store and never materialized beyond N.
    cost = pl.CostEstimate(
        flops=2 * N * in_dim * out_pad,
        transcendentals=0,
        bytes_accessed=N * in_dim * x.dtype.itemsize
        + in_dim * out_pad * 2
        + out_pad * 4
        + N * out_pad * 4,
    )

    out = pl.pallas_call(
        _fused_head_kernel,
        out_shape=jax.ShapeDtypeStruct((N, out_pad), jnp.float32),
        grid_spec=pl.GridSpec(
            grid=grid,
            in_specs=[
                pl.BlockSpec((tm, in_dim), lambda i: (i, 0)),       # x row tile
                pl.BlockSpec((in_dim, out_pad), lambda i: (0, 0)),  # fused W (VMEM-resident)
                pl.BlockSpec((1, out_pad), lambda i: (0, 0)),       # fused bias
            ],
            out_specs=pl.BlockSpec((tm, out_pad), lambda i: (i, 0)),
        ),
        compiler_params=pltpu.CompilerParams(
            dimension_semantics=("parallel",),
            vmem_limit_bytes=32 * 1024 * 1024,
        ),
        cost_estimate=cost,
    )(x, w_fused, b_fused)

    # Strip lane padding and split the two heads (cheap XLA slices).
    cls_scores = out[:, :out_c]
    bbox_pred = out[:, out_c:out_total]
    return cls_scores, bbox_pred


def two_headed_forward(x, w_cls, b_cls, w_bbox, b_bbox):
    """Convenience path: fuses params on the fly. For repeated calls, hoist
    `prepare_fused_params` to init time and call `two_headed_forward_fused`."""
    N = x.shape[0]
    out_c = w_cls.shape[1]
    if N == 0:  # grid >= 1 guard: nothing to do for zero RoIs.
        return (jnp.zeros((0, out_c), jnp.float32),
                jnp.zeros((0, w_bbox.shape[1]), jnp.float32))
    w_p, b_p, out_c, out_total = prepare_fused_params(w_cls, b_cls, w_bbox, b_bbox)
    return two_headed_forward_fused(
        x, w_p, b_p, out_c=out_c, out_total=out_total, tm=_choose_tm(N))


def init_two_headed_params(key, in_dim, out_dim, dtype=jnp.float32):
    """Deterministic init mimicking torch.nn.Linear's U(-1/sqrt(in), 1/sqrt(in)).
    Weights stored pre-transposed as (in_dim, out) == W_torch.T."""
    k1, k2, k3, k4 = jax.random.split(key, 4)
    bound = 1.0 / jnp.sqrt(in_dim)
    w_cls = jax.random.uniform(k1, (in_dim, out_dim), dtype, -bound, bound)
    b_cls = jax.random.uniform(k2, (1, out_dim), dtype, -bound, bound)
    w_bbox = jax.random.uniform(k3, (in_dim, out_dim * 4), dtype, -bound, bound)
    b_bbox = jax.random.uniform(k4, (1, out_dim * 4), dtype, -bound, bound)
    return w_cls, b_cls, w_bbox, b_bbox


if __name__ == "__main__":
    key = jax.random.PRNGKey(0)
    kx, kp = jax.random.split(key)

    # Shapes consistent with the module: box-head features are 1024-dim
    # (TwoHeaded(1024, n_dim)); arbitrary (non-multiple-of-128) RoI count to
    # exercise the ragged last tile; _choose_tm(200)=128 -> 2 grid steps.
    n_rois = 200
    in_dim = 1024
    n_dim = 8  # number of classes

    x = jax.random.normal(kx, (n_rois, in_dim), jnp.float32)
    w_cls, b_cls, w_bbox, b_bbox = init_two_headed_params(kp, in_dim, n_dim)

    # One-time parameter prep (hoisted out of the forward path).
    w_p, b_p, out_c, out_total = prepare_fused_params(w_cls, b_cls, w_bbox, b_bbox)
    tm = _choose_tm(n_rois)

    cls_scores, bbox_pred = two_headed_forward_fused(
        x, w_p, b_p, out_c=out_c, out_total=out_total, tm=tm)
    jax.block_until_ready((cls_scores, bbox_pred))

    assert cls_scores.shape == (n_rois, n_dim)
    assert bbox_pred.shape == (n_rois, n_dim * 4)

    # Reference 1: same bf16 operand quantization, f32 accumulation (tight).
    x_bf = x.astype(jnp.bfloat16)
    ref_cls_bf = jnp.dot(x_bf, w_cls.astype(jnp.bfloat16),
                         preferred_element_type=jnp.float32) + b_cls
    ref_bbox_bf = jnp.dot(x_bf, w_bbox.astype(jnp.bfloat16),
                          preferred_element_type=jnp.float32) + b_bbox
    assert jnp.allclose(cls_scores, ref_cls_bf, atol=1e-3, rtol=1e-3)
    assert jnp.allclose(bbox_pred, ref_bbox_bf, atol=1e-3, rtol=1e-3)

    # Reference 2: full-f32 torch.nn.Linear semantics (loose, bf16 quant error).
    ref_cls = x @ w_cls + b_cls
    ref_bbox = x @ w_bbox + b_bbox
    assert jnp.allclose(cls_scores, ref_cls, atol=5e-2, rtol=5e-2)
    assert jnp.allclose(bbox_pred, ref_bbox, atol=5e-2, rtol=5e-2)

    # Also exercise the convenience (fuse-on-the-fly) path once.
    c2, b2 = two_headed_forward(x, w_cls, b_cls, w_bbox, b_bbox)
    jax.block_until_ready((c2, b2))
    assert jnp.allclose(c2, cls_scores) and jnp.allclose(b2, bbox_pred)

    print("KERNEL_OK")
</pallas_src>

<mosaic_0001>
module attributes {stable_mosaic.version = 11 : i64} {
  func.func @_fused_head_kernel(%arg0: i32, %arg1: memref<128x1024xf32, #tpu.memory_space<vmem>>, %arg2: memref<1024x128xbf16, #tpu.memory_space<vmem>>, %arg3: memref<1x128xf32, #tpu.memory_space<vmem>>, %arg4: memref<128x128xf32, #tpu.memory_space<vmem>>) attributes {dimension_semantics = [#tpu.dimension_semantics<parallel>], iteration_bounds = array<i64: 2>, scalar_prefetch = 0 : i64, scratch_operands = 0 : i64, tpu.core_type = #tpu.core_type<tc>, window_params = [{transform_indices = @transform_0, window_bounds = array<i64: 128, 1024>}, {pipeline_mode = #tpu.pipeline_mode<synchronous>, transform_indices = @transform_1, window_bounds = array<i64: 1024, 128>}, {pipeline_mode = #tpu.pipeline_mode<synchronous>, transform_indices = @transform_2, window_bounds = array<i64: 1, 128>}, {transform_indices = @transform_3, window_bounds = array<i64: 128, 128>}]} {
    %c0 = arith.constant 0 : index
    %c0_0 = arith.constant 0 : index
    %0 = vector.load %arg1[%c0, %c0_0] : memref<128x1024xf32, #tpu.memory_space<vmem>>, vector<128x1024xf32>
    %1 = arith.truncf %0 : vector<128x1024xf32> to vector<128x1024xbf16>
    %c0_1 = arith.constant 0 : index
    %c0_2 = arith.constant 0 : index
    %2 = vector.load %arg2[%c0_1, %c0_2] : memref<1024x128xbf16, #tpu.memory_space<vmem>>, vector<1024x128xbf16>
    %cst = arith.constant dense<0.000000e+00> : vector<128x128xf32>
    %3 = tpu.matmul %1, %2, %cst {dimension_numbers = #tpu.dot_dimension_numbers<[1], [0], [0], [1], [0, 0, 1, 1], [], []>} : vector<128x1024xbf16>, vector<1024x128xbf16>, vector<128x128xf32> -> vector<128x128xf32>
    %c0_3 = arith.constant 0 : index
    %c0_4 = arith.constant 0 : index
    %4 = vector.load %arg3[%c0_3, %c0_4] : memref<1x128xf32, #tpu.memory_space<vmem>>, vector<1x128xf32>
    %5 = vector.broadcast %4 : vector<1x128xf32> to vector<128x128xf32>
    %6 = arith.addf %3, %5 : vector<128x128xf32>
    %c0_5 = arith.constant 0 : index
    %c0_6 = arith.constant 0 : index
    %7 = vector.load %arg4[%c0_5, %c0_6] : memref<128x128xf32, #tpu.memory_space<vmem>>, vector<128x128xf32>
    tpu.vector_store %arg4[%c0_5, %c0_6], %6 {strides = array<i32>} : memref<128x128xf32, #tpu.memory_space<vmem>>, vector<128x128xf32>,
    return
  }
  func.func @transform_0(%arg0: i32) -> (i32, i32) {
    %c0_i32 = arith.constant 0 : i32
    %c0_i32_0 = arith.constant 0 : i32
    return %arg0, %c0_i32 : i32, i32
  }
  func.func @transform_1(%arg0: i32) -> (i32, i32) {
    %c0_i32 = arith.constant 0 : i32
    %c0_i32_0 = arith.constant 0 : i32
    %c0_i32_1 = arith.constant 0 : i32
    return %c0_i32, %c0_i32_0 : i32, i32
  }
  func.func @transform_2(%arg0: i32) -> (i32, i32) {
    %c0_i32 = arith.constant 0 : i32
    %c0_i32_0 = arith.constant 0 : i32
    %c0_i32_1 = arith.constant 0 : i32
    return %c0_i32, %c0_i32_0 : i32, i32
  }
  func.func @transform_3(%arg0: i32) -> (i32, i32) {
    %c0_i32 = arith.constant 0 : i32
    %c0_i32_0 = arith.constant 0 : i32
    return %arg0, %c0_i32 : i32, i32
  }
}

</mosaic_0001>

<llo_original>
// kernel: two_headed_forward_fused.1
$region0: #{two_headed_forward_fused.1}
  #allocation0 [shape = 'u32[]', space=smem, size = 0x4, offset = 0x4, fixed_abs, tag = 'smem constant byte address 0x4 - core index']
  #allocation1 [shape = 'u32[72,128]{1,0:T(1,128)}', space=vmem, size = 0x9000, scoped, tag = 'internal scratch']
  %s0 = inlined_call_operand.hbm [shape: f32[200,1024], index: 0, kind: input, shape index: {}]
  %s1 = inlined_call_operand.hbm [shape: bf16[1024,128], index: 1, kind: input, shape index: {}]
  %s2 = inlined_call_operand.vmem [shape: f32[1,128], index: 2, kind: input, shape index: {}]
  %s3 = inlined_call_operand.vmem [shape: f32[200,128], index: 3, kind: output, shape index: {}]
  %s4 = sld [smem:[#allocation0]]
  $region101: #{two_headed_forward_fused.1} parent=0
    _
  %s6 = ssub.s32 1, %s4
  %s7 = scalar_select 0, %s6, %s4
  $region1: #{two_headed_forward_fused.1} parent=0
    #allocation2 [shape = 'u8[1048576]{0}', space=vmem, size = 0x100000, scoped, tag = 'input window, operand 0']
    #allocation3 [shape = 's32[2]{0}', space=sflag, size = 0x8, scoped, tag = 'scoped memory for two_headed_forward_fused.1']
    #allocation4 [shape = 'u8[262144]{0}', space=vmem, size = 0x40000, scoped, tag = 'input window, operand 1, single buffered']
    #allocation5 [shape = 's32[1]{0}', space=sflag, size = 0x4, scoped, tag = 'scoped memory for two_headed_forward_fused.1']
    #allocation6 [shape = 'u8[131072]{0}', space=vmem, size = 0x20000, scoped, tag = 'output window, operand 0']
    %8 = vsyncpa [#allocation3], 0
    %s9 = scalar_lea.sflag [#allocation3], 1
    %10 = vsyncpa %s9, 0
    %11 = vsyncpa [#allocation5], 0
    loop: start=0, step=1, limit=4
    $region2: #{two_headed_forward_fused.1} parent=1 // loop_pre_header
      _
    $region3: #{two_headed_forward_fused.1} parent=1 // loop_header
      %s13 = sphi 0, %s17
      %p14 = scmp.ge.s32.totalorder %s13, 4
      %s23 = sphi 0, %s25
      %s26 = sphi 0, %s23
      %s27 = sphi 0, %s26
      %s43 = sphi 0, %s27
      %s47 = sphi 0, %s47
      %s49 = sphi 0, %s47
      %s50 = sphi 0, %s49
      %s64 = sphi 0, %s50
      %s68 = sphi 0, %s68
      %s70 = sphi 0, %s68
      %s71 = sphi 0, %s70
      %s85 = sphi 0, %s71
      %s91 = sphi 0, %s93
      %s94 = sphi 0, %s91
      %s95 = sphi 0, %s94
      %s111 = sphi 0, %s95
    $region4: #{two_headed_forward_fused.1} parent=1 // loop_header_branch
      %16 = sbr.rel (%p14) target = $region8
    $region5: #{two_headed_forward_fused.1} parent=1 // loop_body
      %s18 = ssub.s32 %s13, 1
      %s19 = ssub.s32 %s13, 2
      %s20 = sadd.s32 %s13, 1
      %s21 = ssub.s32 %s13, %s20
      %p22 = scmp.eq.s32.totalorder %s21, 0
      %s24 = sadd.s32 %s23, 1
      %s25 = scalar_select %p22, %s23, %s24
      %p28 = pneg %p22
      %p29 = scmp.eq.s32.totalorder %s13, 1
      %p30 = por %p28, %p29
      %p31 = scmp.ne.s32.totalorder %s23, %s26
      %p32 = scmp.eq.s32.totalorder %s13, 0
      %p33 = por %p31, %p32
      %p34 = scmp.ne.s32.totalorder %s23, %s26
      %p35 = scmp.eq.s32.totalorder %s18, 1
      %p36 = por %p34, %p35
      %p37 = scmp.ne.s32.totalorder %s26, %s27
      %p38 = scmp.eq.s32.totalorder %s18, 0
      %p39 = por %p37, %p38
      %p40 = scmp.ne.s32.totalorder %s26, %s27
      %p41 = scmp.eq.s32.totalorder %s19, 1
      %p42 = por %p40, %p41
      %p44 = scmp.ne.s32.totalorder %s27, %s43
      %p45 = scmp.eq.s32.totalorder %s19, 0
      %p46 = por %p44, %p45
      %s48 = sadd.s32 %s47, 1
      %p51 = scmp.eq.s32.totalorder %s13, 1
      %p52 = scmp.ne.s32.totalorder %s47, %s49
      %p53 = scmp.eq.s32.totalorder %s13, 0
      %p54 = por %p52, %p53
      %p55 = scmp.ne.s32.totalorder %s47, %s49
      %p56 = scmp.eq.s32.totalorder %s18, 1
      %p57 = por %p55, %p56
      %p58 = scmp.ne.s32.totalorder %s49, %s50
      %p59 = scmp.eq.s32.totalorder %s18, 0
      %p60 = por %p58, %p59
      %p61 = scmp.ne.s32.totalorder %s49, %s50
      %p62 = scmp.eq.s32.totalorder %s19, 1
      %p63 = por %p61, %p62
      %p65 = scmp.ne.s32.totalorder %s50, %s64
      %p66 = scmp.eq.s32.totalorder %s19, 0
      %p67 = por %p65, %p66
      %s69 = sadd.s32 %s68, 1
      %p72 = scmp.eq.s32.totalorder %s13, 1
      %p73 = scmp.ne.s32.totalorder %s68, %s70
      %p74 = scmp.eq.s32.totalorder %s13, 0
      %p75 = por %p73, %p74
      %p76 = scmp.ne.s32.totalorder %s68, %s70
      %p77 = scmp.eq.s32.totalorder %s18, 1
      %p78 = por %p76, %p77
      %p79 = scmp.ne.s32.totalorder %s70, %s71
      %p80 = scmp.eq.s32.totalorder %s18, 0
      %p81 = por %p79, %p80
      %p82 = scmp.ne.s32.totalorder %s70, %s71
      %p83 = scmp.eq.s32.totalorder %s19, 1
      %p84 = por %p82, %p83
      %p86 = scmp.ne.s32.totalorder %s71, %s85
      %p87 = scmp.eq.s32.totalorder %s19, 0
      %p88 = por %p86, %p87
      %s89 = ssub.s32 %s13, %s20
      %p90 = scmp.eq.s32.totalorder %s89, 0
      %s92 = sadd.s32 %s91, 1
      %s93 = scalar_select %p90, %s91, %s92
      %p96 = pneg %p90
      %p97 = scmp.eq.s32.totalorder %s13, 1
      %p98 = por %p96, %p97
      %p99 = scmp.ne.s32.totalorder %s91, %s94
      %p100 = scmp.eq.s32.totalorder %s13, 0
      %p101 = por %p99, %p100
      %p102 = scmp.ne.s32.totalorder %s91, %s94
      %p103 = scmp.eq.s32.totalorder %s18, 1
      %p104 = por %p102, %p103
      %p105 = scmp.ne.s32.totalorder %s94, %s95
      %p106 = scmp.eq.s32.totalorder %s18, 0
      %p107 = por %p105, %p106
      %p108 = scmp.ne.s32.totalorder %s94, %s95
      %p109 = scmp.eq.s32.totalorder %s19, 1
      %p110 = por %p108, %p109
      %p112 = scmp.ne.s32.totalorder %s95, %s111
      %p113 = scmp.eq.s32.totalorder %s19, 0
      %p114 = por %p112, %p113
      %p115 = scmp.le.s32.totalorder 1, %s13
      %p116 = scmp.lt.s32.totalorder %s13, 3
      %p117 = pnand %p115, %p116
      %p118 = pneg %p117
      // Predicated region
      $region9: #{two_headed_forward_fused.1} parent=5 // pred_check
        _
      $region10: #{two_headed_forward_fused.1} parent=5 // pred_check_branch
        %120 = sbr.rel (%p117) target = $region12
      $region11: #{two_headed_forward_fused.1} parent=5 // pred_region
        %s121 = ssub.s32 %s13, 1
        // Predicated region
        $region13: #{two_headed_forward_fused.1} parent=11 // pred_check
          %p122 = pneg %p60
        $region14: #{two_headed_forward_fused.1} parent=11 // pred_check_branch
          %124 = sbr.rel (%p122) target = $region16
        $region15: #{two_headed_forward_fused.1} parent=11 // pred_region
          %126 = vsyncadd [#allocation5], 0
          %s127 = sshll.u32 %s1, 4
          %s128 = int_to_ptr.hbm [resolvable:$true] %s127
          %s129 = sshll.u32 [#allocation4], 4
          %s130 = int_to_ptr.vmem [resolvable:$true] %s129
          %135 = dma.hbm_to_vmem [thread:$0]  %s128, 8192, %s130, [#allocation5], 64, 64, 4
        $region16: #{two_headed_forward_fused.1} parent=11 // pred_fallthru
          _
        // Predicated region
        $region17: #{two_headed_forward_fused.1} parent=11 // pred_check
          %p136 = pneg %p81
        $region18: #{two_headed_forward_fused.1} parent=11 // pred_check_branch
          %138 = sbr.rel (%p136) target = $region20
        $region19: #{two_headed_forward_fused.1} parent=11 // pred_region
          _
        $region20: #{two_headed_forward_fused.1} parent=11 // pred_fallthru
          _
      $region12: #{two_headed_forward_fused.1} parent=5 // pred_fallthru
        _
      %p139 = scmp.lt.s32.totalorder %s13, 2
      // Predicated region
      $region21: #{two_headed_forward_fused.1} parent=5 // pred_check
        %p140 = pneg %p139
      $region22: #{two_headed_forward_fused.1} parent=5 // pred_check_branch
        %142 = sbr.rel (%p140) target = $region24
      $region23: #{two_headed_forward_fused.1} parent=5 // pred_region
        // Predicated region
        $region25: #{two_headed_forward_fused.1} parent=23 // pred_check
          %p143 = pneg %p33
        $region26: #{two_headed_forward_fused.1} parent=23 // pred_check_branch
          %145 = sbr.rel (%p143) target = $region28
        $region27: #{two_headed_forward_fused.1} parent=23 // pred_region
          %s146 = sand.u32 %s23, 1
          %s147 = scalar_lea.sflag [#allocation3], %s146
          %s148 = sand.u32 %s23, 1
          %s149 = smul.addr %s148, 1024
          %s150 = scalar_lea.vmem [#allocation2], %s149
          %s151 = smul.u32 16, %s13
          %s152 = ssub.s32 25, %s151
          %p153 = scmp.lt.s32.totalorder %s152, 16
          %s154 = scalar_select %p153, %s152, 16
          %s155 = smul.u32 8, %s154
          %s156 = smul.u32 %s155, 8
          %s157 = ssub.s32 1024, %s156
          %s158 = sshll.u32 %s157, 4
          %159 = vsyncadd %s147, %s158
          %p160 = scmp.ne.s32.totalorder 0, %s156
          %s161 = smul.addr %s151, 8
          %s162 = smul.addr %s161, 8
          %s163 = scalar_lea.hbm %s0, %s162
          %s164 = smul.u32 64, %s154
          %s165 = sshll.u32 %s163, 4
          %s166 = int_to_ptr.hbm [resolvable:$true] %s165
          %s167 = sshll.u32 %s150, 4
          %s168 = int_to_ptr.vmem [resolvable:$true] %s167
          %s169 = sshll.u32 %s164, 4
          %173 = dma.hbm_to_vmem [thread:$0]  (%p160), %s166, %s169, %s168, %s147, 1024, 1024, 64
        $region28: #{two_headed_forward_fused.1} parent=23 // pred_fallthru
          _
      $region24: #{two_headed_forward_fused.1} parent=5 // pred_fallthru
        _
      %p174 = scmp.le.s32.totalorder 1, %s13
      %p175 = scmp.lt.s32.totalorder %s13, 3
      %p176 = pnand %p174, %p175
      %p177 = pneg %p176
      // Predicated region
      $region29: #{two_headed_forward_fused.1} parent=5 // pred_check
        _
      $region30: #{two_headed_forward_fused.1} parent=5 // pred_check_branch
        %179 = sbr.rel (%p176) target = $region32
      $region31: #{two_headed_forward_fused.1} parent=5 // pred_region
        %s180 = ssub.s32 %s13, 1
        %s181 = sand.u32 %s26, 1
        %s182 = scalar_lea.sflag [#allocation3], %s181
        %s183 = sand.u32 %s26, 1
        %s184 = smul.addr %s183, 1024
        %s185 = scalar_lea.vmem [#allocation2], %s184
        // Predicated region
        $region33: #{two_headed_forward_fused.1} parent=31 // pred_check
          %p186 = pneg %p39
        $region34: #{two_headed_forward_fused.1} parent=31 // pred_check_branch
          %188 = sbr.rel (%p186) target = $region36
        $region35: #{two_headed_forward_fused.1} parent=31 // pred_region
          %190 = dma.done %s182, 16384
        $region36: #{two_headed_forward_fused.1} parent=31 // pred_fallthru
          _
        // Predicated region
        $region37: #{two_headed_forward_fused.1} parent=31 // pred_check
          %p191 = pneg %p60
        $region38: #{two_headed_forward_fused.1} parent=31 // pred_check_branch
          %193 = sbr.rel (%p191) target = $region40
        $region39: #{two_headed_forward_fused.1} parent=31 // pred_region
          %195 = dma.done [#allocation5], 8192
        $region40: #{two_headed_forward_fused.1} parent=31 // pred_fallthru
          _
        %s196 = sand.u32 %s26, 1
        %s197 = scalar_lea.sflag [#allocation3], %s196
        %s198 = sand.u32 %s26, 1
        %s199 = smul.addr %s198, 1024
        %s200 = scalar_lea.vmem [#allocation2], %s199
        %p201 = pneg %p39
        %p202 = pneg %p36
        %p203 = pneg %p60
        %p204 = pneg %p57
        %p205 = pneg %p81
        %p206 = pneg %p78
        %p207 = pneg %p107
        %p208 = pneg %p104
        %s209 = sand.u32 %s94, 1
        %s210 = sand.u32 %s94, 1
        %s211 = smul.addr %s210, 128
        %s212 = scalar_lea.vmem [#allocation6], %s211
        %s213 = smul.u32 16, %s18
        %s214 = ssub.s32 25, %s213
        %p215 = scmp.lt.s32.totalorder %s214, 16
        %s216 = scalar_select %p215, %s214, 16
        %s217 = smul.u32 8, %s216
        %s218 = smul.u32 %s217, 8
        %s219 = smul.u32 16, %s18
        %s220 = ssub.s32 25, %s219
        %p221 = scmp.lt.s32.totalorder %s220, 16
        %s222 = scalar_select %p221, %s220, 16
        %s223 = smul.u32 8, %s222
        %v224 = vld [vmem:[%s185] sm:$0xff]
        %v225 = vld [vmem:[%s185 + $0x8] sm:$0xff]
        %v226 = vld [vmem:[%s185 + $0x10] sm:$0xff]
        %v227 = vld [vmem:[%s185 + $0x18] sm:$0xff]
        %v228 = vld [vmem:[%s185 + $0x20] sm:$0xff]
        %v229 = vld [vmem:[%s185 + $0x28] sm:$0xff]
        %v230 = vld [vmem:[%s185 + $0x30] sm:$0xff]
        %v231 = vld [vmem:[%s185 + $0x38] sm:$0xff]
        %v232 = vld [vmem:[%s185 + $0x40] sm:$0xff]
        %v233 = vld [vmem:[%s185 + $0x48] sm:$0xff]
        %v234 = vld [vmem:[%s185 + $0x50] sm:$0xff]
        %v235 = vld [vmem:[%s185 + $0x58] sm:$0xff]
        %v236 = vld [vmem:[%s185 + $0x60] sm:$0xff]
        %v237 = vld [vmem:[%s185 + $0x68] sm:$0xff]
        %v238 = vld [vmem:[%s185 + $0x70] sm:$0xff]
        %v239 = vld [vmem:[%s185 + $0x78] sm:$0xff]
        %v240 = vld [vmem:[%s185 + $0x80] sm:$0xff]
        %v241 = vld [vmem:[%s185 + $0x88] sm:$0xff]
        %v242 = vld [vmem:[%s185 + $0x90] sm:$0xff]
        %v243 = vld [vmem:[%s185 + $0x98] sm:$0xff]
        %v244 = vld [vmem:[%s185 + $0xa0] sm:$0xff]
        %v245 = vld [vmem:[%s185 + $0xa8] sm:$0xff]
        %v246 = vld [vmem:[%s185 + $0xb0] sm:$0xff]
        %v247 = vld [vmem:[%s185 + $0xb8] sm:$0xff]
        %v248 = vld [vmem:[%s185 + $0xc0] sm:$0xff]
        %v249 = vld [vmem:[%s185 + $0xc8] sm:$0xff]
        %v250 = vld [vmem:[%s185 + $0xd0] sm:$0xff]
        %v251 = vld [vmem:[%s185 + $0xd8] sm:$0xff]
        %v252 = vld [vmem:[%s185 + $0xe0] sm:$0xff]
        %v253 = vld [vmem:[%s185 + $0xe8] sm:$0xff]
        %v254 = vld [vmem:[%s185 + $0xf0] sm:$0xff]
        %v255 = vld [vmem:[%s185 + $0xf8] sm:$0xff]
        %v256 = vld [vmem:[%s185 + $0x100] sm:$0xff]
        %v257 = vld [vmem:[%s185 + $0x108] sm:$0xff]
        %v258 = vld [vmem:[%s185 + $0x110] sm:$0xff]
        %v259 = vld [vmem:[%s185 + $0x118] sm:$0xff]
        %v260 = vld [vmem:[%s185 + $0x120] sm:$0xff]
        %v261 = vld [vmem:[%s185 + $0x128] sm:$0xff]
        %v262 = vld [vmem:[%s185 + $0x130] sm:$0xff]
        %v263 = vld [vmem:[%s185 + $0x138] sm:$0xff]
        %v264 = vld [vmem:[%s185 + $0x140] sm:$0xff]
        %v265 = vld [vmem:[%s185 + $0x148] sm:$0xff]
        %v266 = vld [vmem:[%s185 + $0x150] sm:$0xff]
        %v267 = vld [vmem:[%s185 + $0x158] sm:$0xff]
        %v268 = vld [vmem:[%s185 + $0x160] sm:$0xff]
        %v269 = vld [vmem:[%s185 + $0x168] sm:$0xff]
        %v270 = vld [vmem:[%s185 + $0x170] sm:$0xff]
        %v271 = vld [vmem:[%s185 + $0x178] sm:$0xff]
        %v272 = vld [vmem:[%s185 + $0x180] sm:$0xff]
        %v273 = vld [vmem:[%s185 + $0x188] sm:$0xff]
        %v274 = vld [vmem:[%s185 + $0x190] sm:$0xff]
        %v275 = vld [vmem:[%s185 + $0x198] sm:$0xff]
        %v276 = vld [vmem:[%s185 + $0x1a0] sm:$0xff]
        %v277 = vld [vmem:[%s185 + $0x1a8] sm:$0xff]
        %v278 = vld [vmem:[%s185 + $0x1b0] sm:$0xff]
        %v279 = vld [vmem:[%s185 + $0x1b8] sm:$0xff]
        %v280 = vld [vmem:[%s185 + $0x1c0] sm:$0xff]
        %v281 = vld [vmem:[%s185 + $0x1c8] sm:$0xff]
        %v282 = vld [vmem:[%s185 + $0x1d0] sm:$0xff]
        %v283 = vld [vmem:[%s185 + $0x1d8] sm:$0xff]
        %v284 = vld [vmem:[%s185 + $0x1e0] sm:$0xff]
        %v285 = vld [vmem:[%s185 + $0x1e8] sm:$0xff]
        %v286 = vld [vmem:[%s185 + $0x1f0] sm:$0xff]
        %v287 = vld [vmem:[%s185 + $0x1f8] sm:$0xff]
        %v288 = vld [vmem:[%s185 + $0x200] sm:$0xff]
        %v289 = vld [vmem:[%s185 + $0x208] sm:$0xff]
        %v290 = vld [vmem:[%s185 + $0x210] sm:$0xff]
        %v291 = vld [vmem:[%s185 + $0x218] sm:$0xff]
        %v292 = vld [vmem:[%s185 + $0x220] sm:$0xff]
        %v293 = vld [vmem:[%s185 + $0x228] sm:$0xff]
        %v294 = vld [vmem:[%s185 + $0x230] sm:$0xff]
        %v295 = vld [vmem:[%s185 + $0x238] sm:$0xff]
        %v296 = vld [vmem:[%s185 + $0x240] sm:$0xff]
        %v297 = vld [vmem:[%s185 + $0x248] sm:$0xff]
        %v298 = vld [vmem:[%s185 + $0x250] sm:$0xff]
        %v299 = vld [vmem:[%s185 + $0x258] sm:$0xff]
        %v300 = vld [vmem:[%s185 + $0x260] sm:$0xff]
        %v301 = vld [vmem:[%s185 + $0x268] sm:$0xff]
        %v302 = vld [vmem:[%s185 + $0x270] sm:$0xff]
        %v303 = vld [vmem:[%s185 + $0x278] sm:$0xff]
        %v304 = vld [vmem:[%s185 + $0x280] sm:$0xff]
        %v305 = vld [vmem:[%s185 + $0x288] sm:$0xff]
        %v306 = vld [vmem:[%s185 + $0x290] sm:$0xff]
        %v307 = vld [vmem:[%s185 + $0x298] sm:$0xff]
        %v308 = vld [vmem:[%s185 + $0x2a0] sm:$0xff]
        %v309 = vld [vmem:[%s185 + $0x2a8] sm:$0xff]
        %v310 = vld [vmem:[%s185 + $0x2b0] sm:$0xff]
        %v311 = vld [vmem:[%s185 + $0x2b8] sm:$0xff]
        %v312 = vld [vmem:[%s185 + $0x2c0] sm:$0xff]
        %v313 = vld [vmem:[%s185 + $0x2c8] sm:$0xff]
        %v314 = vld [vmem:[%s185 + $0x2d0] sm:$0xff]
        %v315 = vld [vmem:[%s185 + $0x2d8] sm:$0xff]
        %v316 = vld [vmem:[%s185 + $0x2e0] sm:$0xff]
        %v317 = vld [vmem:[%s185 + $0x2e8] sm:$0xff]
        %v318 = vld [vmem:[%s185 + $0x2f0] sm:$0xff]
        %v319 = vld [vmem:[%s185 + $0x2f8] sm:$0xff]
        %v320 = vld [vmem:[%s185 + $0x300] sm:$0xff]
        %v321 = vld [vmem:[%s185 + $0x308] sm:$0xff]
        %v322 = vld [vmem:[%s185 + $0x310] sm:$0xff]
        %v323 = vld [vmem:[%s185 + $0x318] sm:$0xff]
        %v324 = vld [vmem:[%s185 + $0x320] sm:$0xff]
        %v325 = vld [vmem:[%s185 + $0x328] sm:$0xff]
        %v326 = vld [vmem:[%s185 + $0x330] sm:$0xff]
        %v327 = vld [vmem:[%s185 + $0x338] sm:$0xff]
        %v328 = vld [vmem:[%s185 + $0x340] sm:$0xff]
        %v329 = vld [vmem:[%s185 + $0x348] sm:$0xff]
        %v330 = vld [vmem:[%s185 + $0x350] sm:$0xff]
        %v331 = vld [vmem:[%s185 + $0x358] sm:$0xff]
        %v332 = vld [vmem:[%s185 + $0x360] sm:$0xff]
        %v333 = vld [vmem:[%s185 + $0x368] sm:$0xff]
        %v334 = vld [vmem:[%s185 + $0x370] sm:$0xff]
        %v335 = vld [vmem:[%s185 + $0x378] sm:$0xff]
        %v336 = vld [vmem:[%s185 + $0x380] sm:$0xff]
        %v337 = vld [vmem:[%s185 + $0x388] sm:$0xff]
        %v338 = vld [vmem:[%s185 + $0x390] sm:$0xff]
        %v339 = vld [vmem:[%s185 + $0x398] sm:$0xff]
        %v340 = vld [vmem:[%s185 + $0x3a0] sm:$0xff]
        %v341 = vld [vmem:[%s185 + $0x3a8] sm:$0xff]
        %v342 = vld [vmem:[%s185 + $0x3b0] sm:$0xff]
        %v343 = vld [vmem:[%s185 + $0x3b8] sm:$0xff]
        %v344 = vld [vmem:[%s185 + $0x3c0] sm:$0xff]
        %v345 = vld [vmem:[%s185 + $0x3c8] sm:$0xff]
        %v346 = vld [vmem:[%s185 + $0x3d0] sm:$0xff]
        %v347 = vld [vmem:[%s185 + $0x3d8] sm:$0xff]
        %v348 = vld [vmem:[%s185 + $0x3e0] sm:$0xff]
        %v349 = vld [vmem:[%s185 + $0x3e8] sm:$0xff]
        %v350 = vld [vmem:[%s185 + $0x3f0] sm:$0xff]
        %v351 = vld [vmem:[%s185 + $0x3f8] sm:$0xff]
        %v352 = vpack.c.bf16 %v232, %v224
        %v353 = vpack.c.bf16 %v233, %v225
        %v354 = vpack.c.bf16 %v234, %v226
        %v355 = vpack.c.bf16 %v235, %v227
        %v356 = vpack.c.bf16 %v236, %v228
        %v357 = vpack.c.bf16 %v237, %v229
        %v358 = vpack.c.bf16 %v238, %v230
        %v359 = vpack.c.bf16 %v239, %v231
        %v360 = vpack.c.bf16 %v248, %v240
        %v361 = vpack.c.bf16 %v249, %v241
        %v362 = vpack.c.bf16 %v250, %v242
        %v363 = vpack.c.bf16 %v251, %v243
        %v364 = vpack.c.bf16 %v252, %v244
        %v365 = vpack.c.bf16 %v253, %v245
        %v366 = vpack.c.bf16 %v254, %v246
        %v367 = vpack.c.bf16 %v255, %v247
        %v368 = vpack.c.bf16 %v264, %v256
        %v369 = vpack.c.bf16 %v265, %v257
        %v370 = vpack.c.bf16 %v266, %v258
        %v371 = vpack.c.bf16 %v267, %v259
        %v372 = vpack.c.bf16 %v268, %v260
        %v373 = vpack.c.bf16 %v269, %v261
        %v374 = vpack.c.bf16 %v270, %v262
        %v375 = vpack.c.bf16 %v271, %v263
        %v376 = vpack.c.bf16 %v280, %v272
        %v377 = vpack.c.bf16 %v281, %v273
        %v378 = vpack.c.bf16 %v282, %v274
        %v379 = vpack.c.bf16 %v283, %v275
        %v380 = vpack.c.bf16 %v284, %v276
        %v381 = vpack.c.bf16 %v285, %v277
        %v382 = vpack.c.bf16 %v286, %v278
        %v383 = vpack.c.bf16 %v287, %v279
        %v384 = vpack.c.bf16 %v296, %v288
        %v385 = vpack.c.bf16 %v297, %v289
        %v386 = vpack.c.bf16 %v298, %v290
        %v387 = vpack.c.bf16 %v299, %v291
        %v388 = vpack.c.bf16 %v300, %v292
        %v389 = vpack.c.bf16 %v301, %v293
        %v390 = vpack.c.bf16 %v302, %v294
        %v391 = vpack.c.bf16 %v303, %v295
        %v392 = vpack.c.bf16 %v312, %v304
        %v393 = vpack.c.bf16 %v313, %v305
        %v394 = vpack.c.bf16 %v314, %v306
        %v395 = vpack.c.bf16 %v315, %v307
        %v396 = vpack.c.bf16 %v316, %v308
        %v397 = vpack.c.bf16 %v317, %v309
        %v398 = vpack.c.bf16 %v318, %v310
        %v399 = vpack.c.bf16 %v319, %v311
        %v400 = vpack.c.bf16 %v328, %v320
        %v401 = vpack.c.bf16 %v329, %v321
        %v402 = vpack.c.bf16 %v330, %v322
        %v403 = vpack.c.bf16 %v331, %v323
        %v404 = vpack.c.bf16 %v332, %v324
        %v405 = vpack.c.bf16 %v333, %v325
        %v406 = vpack.c.bf16 %v334, %v326
        %v407 = vpack.c.bf16 %v335, %v327
        %v408 = vpack.c.bf16 %v344, %v336
        %v409 = vpack.c.bf16 %v345, %v337
        %v410 = vpack.c.bf16 %v346, %v338
        %v411 = vpack.c.bf16 %v347, %v339
        %v412 = vpack.c.bf16 %v348, %v340
        %v413 = vpack.c.bf16 %v349, %v341
        %v414 = vpack.c.bf16 %v350, %v342
        %v415 = vpack.c.bf16 %v351, %v343
        %v416 = vld [vmem:[#allocation4] sm:$0xf]
        %v417 = vld [vmem:[#allocation4 + $0x4] sm:$0xf]
        %v418 = vld [vmem:[#allocation4 + $0x8] sm:$0xf]
        %v419 = vld [vmem:[#allocation4 + $0xc] sm:$0xf]
        %v420 = vld [vmem:[#allocation4 + $0x10] sm:$0xf]
        %v421 = vld [vmem:[#allocation4 + $0x14] sm:$0xf]
        %v422 = vld [vmem:[#allocation4 + $0x18] sm:$0xf]
        %v423 = vld [vmem:[#allocation4 + $0x1c] sm:$0xf]
        %v424 = vld [vmem:[#allocation4 + $0x20] sm:$0xf]
        %v425 = vld [vmem:[#allocation4 + $0x24] sm:$0xf]
        %v426 = vld [vmem:[#allocation4 + $0x28] sm:$0xf]
        %v427 = vld [vmem:[#allocation4 + $0x2c] sm:$0xf]
        %v428 = vld [vmem:[#allocation4 + $0x30] sm:$0xf]
        %v429 = vld [vmem:[#allocation4 + $0x34] sm:$0xf]
        %v430 = vld [vmem:[#allocation4 + $0x38] sm:$0xf]
        %v431 = vld [vmem:[#allocation4 + $0x3c] sm:$0xf]
        %v432 = vld [vmem:[#allocation4 + $0x40] sm:$0xf]
        %v433 = vld [vmem:[#allocation4 + $0x44] sm:$0xf]
        %v434 = vld [vmem:[#allocation4 + $0x48] sm:$0xf]
        %v435 = vld [vmem:[#allocation4 + $0x4c] sm:$0xf]
        %v436 = vld [vmem:[#allocation4 + $0x50] sm:$0xf]
        %v437 = vld [vmem:[#allocation4 + $0x54] sm:$0xf]
        %v438 = vld [vmem:[#allocation4 + $0x58] sm:$0xf]
        %v439 = vld [vmem:[#allocation4 + $0x5c] sm:$0xf]
        %v440 = vld [vmem:[#allocation4 + $0x60] sm:$0xf]
        %v441 = vld [vmem:[#allocation4 + $0x64] sm:$0xf]
        %v442 = vld [vmem:[#allocation4 + $0x68] sm:$0xf]
        %v443 = vld [vmem:[#allocation4 + $0x6c] sm:$0xf]
        %v444 = vld [vmem:[#allocation4 + $0x70] sm:$0xf]
        %v445 = vld [vmem:[#allocation4 + $0x74] sm:$0xf]
        %v446 = vld [vmem:[#allocation4 + $0x78] sm:$0xf]
        %v447 = vld [vmem:[#allocation4 + $0x7c] sm:$0xf]
        %v448 = vld [vmem:[#allocation4 + $0x80] sm:$0xf]
        %v449 = vld [vmem:[#allocation4 + $0x84] sm:$0xf]
        %v450 = vld [vmem:[#allocation4 + $0x88] sm:$0xf]
        %v451 = vld [vmem:[#allocation4 + $0x8c] sm:$0xf]
        %v452 = vld [vmem:[#allocation4 + $0x90] sm:$0xf]
        %v453 = vld [vmem:[#allocation4 + $0x94] sm:$0xf]
        %v454 = vld [vmem:[#allocation4 + $0x98] sm:$0xf]
        %v455 = vld [vmem:[#allocation4 + $0x9c] sm:$0xf]
        %v456 = vld [vmem:[#allocation4 + $0xa0] sm:$0xf]
        %v457 = vld [vmem:[#allocation4 + $0xa4] sm:$0xf]
        %v458 = vld [vmem:[#allocation4 + $0xa8] sm:$0xf]
        %v459 = vld [vmem:[#allocation4 + $0xac] sm:$0xf]
        %v460 = vld [vmem:[#allocation4 + $0xb0] sm:$0xf]
        %v461 = vld [vmem:[#allocation4 + $0xb4] sm:$0xf]
        %v462 = vld [vmem:[#allocation4 + $0xb8] sm:$0xf]
        %v463 = vld [vmem:[#allocation4 + $0xbc] sm:$0xf]
        %v464 = vld [vmem:[#allocation4 + $0xc0] sm:$0xf]
        %v465 = vld [vmem:[#allocation4 + $0xc4] sm:$0xf]
        %v466 = vld [vmem:[#allocation4 + $0xc8] sm:$0xf]
        %v467 = vld [vmem:[#allocation4 + $0xcc] sm:$0xf]
        %v468 = vld [vmem:[#allocation4 + $0xd0] sm:$0xf]
        %v469 = vld [vmem:[#allocation4 + $0xd4] sm:$0xf]
        %v470 = vld [vmem:[#allocation4 + $0xd8] sm:$0xf]
        %v471 = vld [vmem:[#allocation4 + $0xdc] sm:$0xf]
        %v472 = vld [vmem:[#allocation4 + $0xe0] sm:$0xf]
        %v473 = vld [vmem:[#allocation4 + $0xe4] sm:$0xf]
        %v474 = vld [vmem:[#allocation4 + $0xe8] sm:$0xf]
        %v475 = vld [vmem:[#allocation4 + $0xec] sm:$0xf]
        %v476 = vld [vmem:[#allocation4 + $0xf0] sm:$0xf]
        %v477 = vld [vmem:[#allocation4 + $0xf4] sm:$0xf]
        %v478 = vld [vmem:[#allocation4 + $0xf8] sm:$0xf]
        %v479 = vld [vmem:[#allocation4 + $0xfc] sm:$0xf]
        %v480 = vld [vmem:[#allocation4 + $0x100] sm:$0xf]
        %v481 = vld [vmem:[#allocation4 + $0x104] sm:$0xf]
        %v482 = vld [vmem:[#allocation4 + $0x108] sm:$0xf]
        %v483 = vld [vmem:[#allocation4 + $0x10c] sm:$0xf]
        %v484 = vld [vmem:[#allocation4 + $0x110] sm:$0xf]
        %v485 = vld [vmem:[#allocation4 + $0x114] sm:$0xf]
        %v486 = vld [vmem:[#allocation4 + $0x118] sm:$0xf]
        %v487 = vld [vmem:[#allocation4 + $0x11c] sm:$0xf]
        %v488 = vld [vmem:[#allocation4 + $0x120] sm:$0xf]
        %v489 = vld [vmem:[#allocation4 + $0x124] sm:$0xf]
        %v490 = vld [vmem:[#allocation4 + $0x128] sm:$0xf]
        %v491 = vld [vmem:[#allocation4 + $0x12c] sm:$0xf]
        %v492 = vld [vmem:[#allocation4 + $0x130] sm:$0xf]
        %v493 = vld [vmem:[#allocation4 + $0x134] sm:$0xf]
        %v494 = vld [vmem:[#allocation4 + $0x138] sm:$0xf]
        %v495 = vld [vmem:[#allocation4 + $0x13c] sm:$0xf]
        %v496 = vld [vmem:[#allocation4 + $0x140] sm:$0xf]
        %v497 = vld [vmem:[#allocation4 + $0x144] sm:$0xf]
        %v498 = vld [vmem:[#allocation4 + $0x148] sm:$0xf]
        %v499 = vld [vmem:[#allocation4 + $0x14c] sm:$0xf]
        %v500 = vld [vmem:[#allocation4 + $0x150] sm:$0xf]
        %v501 = vld [vmem:[#allocation4 + $0x154] sm:$0xf]
        %v502 = vld [vmem:[#allocation4 + $0x158] sm:$0xf]
        %v503 = vld [vmem:[#allocation4 + $0x15c] sm:$0xf]
        %v504 = vld [vmem:[#allocation4 + $0x160] sm:$0xf]
        %v505 = vld [vmem:[#allocation4 + $0x164] sm:$0xf]
        %v506 = vld [vmem:[#allocation4 + $0x168] sm:$0xf]
        %v507 = vld [vmem:[#allocation4 + $0x16c] sm:$0xf]
        %v508 = vld [vmem:[#allocation4 + $0x170] sm:$0xf]
        %v509 = vld [vmem:[#allocation4 + $0x174] sm:$0xf]
        %v510 = vld [vmem:[#allocation4 + $0x178] sm:$0xf]
        %v511 = vld [vmem:[#allocation4 + $0x17c] sm:$0xf]
        %v512 = vld [vmem:[#allocation4 + $0x180] sm:$0xf]
        %v513 = vld [vmem:[#allocation4 + $0x184] sm:$0xf]
        %v514 = vld [vmem:[#allocation4 + $0x188] sm:$0xf]
        %v515 = vld [vmem:[#allocation4 + $0x18c] sm:$0xf]
        %v516 = vld [vmem:[#allocation4 + $0x190] sm:$0xf]
        %v517 = vld [vmem:[#allocation4 + $0x194] sm:$0xf]
        %v518 = vld [vmem:[#allocation4 + $0x198] sm:$0xf]
        %v519 = vld [vmem:[#allocation4 + $0x19c] sm:$0xf]
        %v520 = vld [vmem:[#allocation4 + $0x1a0] sm:$0xf]
        %v521 = vld [vmem:[#allocation4 + $0x1a4] sm:$0xf]
        %v522 = vld [vmem:[#allocation4 + $0x1a8] sm:$0xf]
        %v523 = vld [vmem:[#allocation4 + $0x1ac] sm:$0xf]
        %v524 = vld [vmem:[#allocation4 + $0x1b0] sm:$0xf]
        %v525 = vld [vmem:[#allocation4 + $0x1b4] sm:$0xf]
        %v526 = vld [vmem:[#allocation4 + $0x1b8] sm:$0xf]
        %v527 = vld [vmem:[#allocation4 + $0x1bc] sm:$0xf]
        %v528 = vld [vmem:[#allocation4 + $0x1c0] sm:$0xf]
        %v529 = vld [vmem:[#allocation4 + $0x1c4] sm:$0xf]
        %v530 = vld [vmem:[#allocation4 + $0x1c8] sm:$0xf]
        %v531 = vld [vmem:[#allocation4 + $0x1cc] sm:$0xf]
        %v532 = vld [vmem:[#allocation4 + $0x1d0] sm:$0xf]
        %v533 = vld [vmem:[#allocation4 + $0x1d4] sm:$0xf]
        %v534 = vld [vmem:[#allocation4 + $0x1d8] sm:$0xf]
        %v535 = vld [vmem:[#allocation4 + $0x1dc] sm:$0xf]
        %v536 = vld [vmem:[#allocation4 + $0x1e0] sm:$0xf]
        %v537 = vld [vmem:[#allocation4 + $0x1e4] sm:$0xf]
        %v538 = vld [vmem:[#allocation4 + $0x1e8] sm:$0xf]
        %v539 = vld [vmem:[#allocation4 + $0x1ec] sm:$0xf]
        %v540 = vld [vmem:[#allocation4 + $0x1f0] sm:$0xf]
        %v541 = vld [vmem:[#allocation4 + $0x1f4] sm:$0xf]
        %v542 = vld [vmem:[#allocation4 + $0x1f8] sm:$0xf]
        %v543 = vld [vmem:[#allocation4 + $0x1fc] sm:$0xf]
        %v544 = vld [vmem:[%s2] sm:$0x1]
        %v546 = vperm.slane %v544, 0
        %v676 = vunpack.c.l.b16 %v416
        %v677 = vunpack.c.l.b16 %v417
        %v678 = vunpack.c.l.b16 %v418
        %v679 = vunpack.c.l.b16 %v419
        %v680 = vunpack.c.l.b16 %v420
        %v681 = vunpack.c.l.b16 %v421
        %v682 = vunpack.c.l.b16 %v422
        %v683 = vunpack.c.l.b16 %v423
        %v684 = vunpack.c.l.b16 %v424
        %v685 = vunpack.c.l.b16 %v425
        %v686 = vunpack.c.l.b16 %v426
        %v687 = vunpack.c.l.b16 %v427
        %v688 = vunpack.c.l.b16 %v428
        %v689 = vunpack.c.l.b16 %v429
        %v690 = vunpack.c.l.b16 %v430
        %v691 = vunpack.c.l.b16 %v431
        %v692 = vunpack.c.l.b16 %v432
        %v693 = vunpack.c.l.b16 %v433
        %v694 = vunpack.c.l.b16 %v434
        %v695 = vunpack.c.l.b16 %v435
        %v696 = vunpack.c.l.b16 %v436
        %v697 = vunpack.c.l.b16 %v437
        %v698 = vunpack.c.l.b16 %v438
        %v699 = vunpack.c.l.b16 %v439
        %v700 = vunpack.c.l.b16 %v440
        %v701 = vunpack.c.l.b16 %v441
        %v702 = vunpack.c.l.b16 %v442
        %v703 = vunpack.c.l.b16 %v443
        %v704 = vunpack.c.l.b16 %v444
        %v705 = vunpack.c.l.b16 %v445
        %v706 = vunpack.c.l.b16 %v446
        %v707 = vunpack.c.l.b16 %v447
        %v708 = vunpack.c.l.b16 %v448
        %v709 = vunpack.c.l.b16 %v449
        %v710 = vunpack.c.l.b16 %v450
        %v711 = vunpack.c.l.b16 %v451
        %v712 = vunpack.c.l.b16 %v452
        %v713 = vunpack.c.l.b16 %v453
        %v714 = vunpack.c.l.b16 %v454
        %v715 = vunpack.c.l.b16 %v455
        %v716 = vunpack.c.l.b16 %v456
        %v717 = vunpack.c.l.b16 %v457
        %v718 = vunpack.c.l.b16 %v458
        %v719 = vunpack.c.l.b16 %v459
        %v720 = vunpack.c.l.b16 %v460
        %v721 = vunpack.c.l.b16 %v461
        %v722 = vunpack.c.l.b16 %v462
        %v723 = vunpack.c.l.b16 %v463
        %v724 = vunpack.c.l.b16 %v464
        %v725 = vunpack.c.l.b16 %v465
        %v726 = vunpack.c.l.b16 %v466
        %v727 = vunpack.c.l.b16 %v467
        %v728 = vunpack.c.l.b16 %v468
        %v729 = vunpack.c.l.b16 %v469
        %v730 = vunpack.c.l.b16 %v470
        %v731 = vunpack.c.l.b16 %v471
        %v732 = vunpack.c.l.b16 %v472
        %v733 = vunpack.c.l.b16 %v473
        %v734 = vunpack.c.l.b16 %v474
        %v735 = vunpack.c.l.b16 %v475
        %v736 = vunpack.c.l.b16 %v476
        %v737 = vunpack.c.l.b16 %v477
        %v738 = vunpack.c.l.b16 %v478
        %v739 = vunpack.c.l.b16 %v479
        %v740 = vunpack.c.l.b16 %v480
        %v741 = vunpack.c.l.b16 %v481
        %v742 = vunpack.c.l.b16 %v482
        %v743 = vunpack.c.l.b16 %v483
        %v744 = vunpack.c.l.b16 %v484
        %v745 = vunpack.c.l.b16 %v485
        %v746 = vunpack.c.l.b16 %v486
        %v747 = vunpack.c.l.b16 %v487
        %v748 = vunpack.c.l.b16 %v488
        %v749 = vunpack.c.l.b16 %v489
        %v750 = vunpack.c.l.b16 %v490
        %v751 = vunpack.c.l.b16 %v491
        %v752 = vunpack.c.l.b16 %v492
        %v753 = vunpack.c.l.b16 %v493
        %v754 = vunpack.c.l.b16 %v494
        %v755 = vunpack.c.l.b16 %v495
        %v756 = vunpack.c.l.b16 %v496
        %v757 = vunpack.c.l.b16 %v497
        %v758 = vunpack.c.l.b16 %v498
        %v759 = vunpack.c.l.b16 %v499
        %v760 = vunpack.c.l.b16 %v500
        %v761 = vunpack.c.l.b16 %v501
        %v762 = vunpack.c.l.b16 %v502
        %v763 = vunpack.c.l.b16 %v503
        %v764 = vunpack.c.l.b16 %v504
        %v765 = vunpack.c.l.b16 %v505
        %v766 = vunpack.c.l.b16 %v506
        %v767 = vunpack.c.l.b16 %v507
        %v768 = vunpack.c.l.b16 %v508
        %v769 = vunpack.c.l.b16 %v509
        %v770 = vunpack.c.l.b16 %v510
        %v771 = vunpack.c.l.b16 %v511
        %v772 = vunpack.c.l.b16 %v512
        %v773 = vunpack.c.l.b16 %v513
        %v774 = vunpack.c.l.b16 %v514
        %v775 = vunpack.c.l.b16 %v515
        %v776 = vunpack.c.l.b16 %v516
        %v777 = vunpack.c.l.b16 %v517
        %v778 = vunpack.c.l.b16 %v518
        %v779 = vunpack.c.l.b16 %v519
        %v780 = vunpack.c.l.b16 %v520
        %v781 = vunpack.c.l.b16 %v521
        %v782 = vunpack.c.l.b16 %v522
        %v783 = vunpack.c.l.b16 %v523
        %v784 = vunpack.c.l.b16 %v524
        %v785 = vunpack.c.l.b16 %v525
        %v786 = vunpack.c.l.b16 %v526
        %v787 = vunpack.c.l.b16 %v527
        %v788 = vunpack.c.l.b16 %v528
        %v789 = vunpack.c.l.b16 %v529
        %v790 = vunpack.c.l.b16 %v530
        %v791 = vunpack.c.l.b16 %v531
        %v792 = vunpack.c.l.b16 %v532
        %v793 = vunpack.c.l.b16 %v533
        %v794 = vunpack.c.l.b16 %v534
        %v795 = vunpack.c.l.b16 %v535
        %v796 = vunpack.c.l.b16 %v536
        %v797 = vunpack.c.l.b16 %v537
        %v798 = vunpack.c.l.b16 %v538
        %v799 = vunpack.c.l.b16 %v539
        %v800 = vunpack.c.l.b16 %v540
        %v801 = vunpack.c.l.b16 %v541
        %v802 = vunpack.c.l.b16 %v542
        %v803 = vunpack.c.l.b16 %v543
        %v804 = vpack.c.b16 %v677, %v676
        %v805 = vpack.c.b16 %v679, %v678
        %v806 = vpack.c.b16 %v681, %v680
        %v807 = vpack.c.b16 %v683, %v682
        %v808 = vpack.c.b16 %v685, %v684
        %v809 = vpack.c.b16 %v687, %v686
        %v810 = vpack.c.b16 %v689, %v688
        %v811 = vpack.c.b16 %v691, %v690
        %v812 = vpack.c.b16 %v693, %v692
        %v813 = vpack.c.b16 %v695, %v694
        %v814 = vpack.c.b16 %v697, %v696
        %v815 = vpack.c.b16 %v699, %v698
        %v816 = vpack.c.b16 %v701, %v700
        %v817 = vpack.c.b16 %v703, %v702
        %v818 = vpack.c.b16 %v705, %v704
        %v819 = vpack.c.b16 %v707, %v706
        %v820 = vpack.c.b16 %v709, %v708
        %v821 = vpack.c.b16 %v711, %v710
        %v822 = vpack.c.b16 %v713, %v712
        %v823 = vpack.c.b16 %v715, %v714
        %v824 = vpack.c.b16 %v717, %v716
        %v825 = vpack.c.b16 %v719, %v718
        %v826 = vpack.c.b16 %v721, %v720
        %v827 = vpack.c.b16 %v723, %v722
        %v828 = vpack.c.b16 %v725, %v724
        %v829 = vpack.c.b16 %v727, %v726
        %v830 = vpack.c.b16 %v729, %v728
        %v831 = vpack.c.b16 %v731, %v730
        %v832 = vpack.c.b16 %v733, %v732
        %v833 = vpack.c.b16 %v735, %v734
        %v834 = vpack.c.b16 %v737, %v736
        %v835 = vpack.c.b16 %v739, %v738
        %v836 = vpack.c.b16 %v741, %v740
        %v837 = vpack.c.b16 %v743, %v742
        %v838 = vpack.c.b16 %v745, %v744
        %v839 = vpack.c.b16 %v747, %v746
        %v840 = vpack.c.b16 %v749, %v748
        %v841 = vpack.c.b16 %v751, %v750
        %v842 = vpack.c.b16 %v753, %v752
        %v843 = vpack.c.b16 %v755, %v754
        %v844 = vpack.c.b16 %v757, %v756
        %v845 = vpack.c.b16 %v759, %v758
        %v846 = vpack.c.b16 %v761, %v760
        %v847 = vpack.c.b16 %v763, %v762
        %v848 = vpack.c.b16 %v765, %v764
        %v849 = vpack.c.b16 %v767, %v766
        %v850 = vpack.c.b16 %v769, %v768
        %v851 = vpack.c.b16 %v771, %v770
        %v852 = vpack.c.b16 %v773, %v772
        %v853 = vpack.c.b16 %v775, %v774
        %v854 = vpack.c.b16 %v777, %v776
        %v855 = vpack.c.b16 %v779, %v778
        %v856 = vpack.c.b16 %v781, %v780
        %v857 = vpack.c.b16 %v783, %v782
        %v858 = vpack.c.b16 %v785, %v784
        %v859 = vpack.c.b16 %v787, %v786
        %v860 = vpack.c.b16 %v789, %v788
        %v861 = vpack.c.b16 %v791, %v790
        %v862 = vpack.c.b16 %v793, %v792
        %v863 = vpack.c.b16 %v795, %v794
        %v864 = vpack.c.b16 %v797, %v796
        %v865 = vpack.c.b16 %v799, %v798
        %v866 = vpack.c.b16 %v801, %v800
        %v867 = vpack.c.b16 %v803, %v802
        %932 = vmatpush.bf16.msra.mxu0 %v811
        %933 = vmatpush.bf16.msra.mxu0 %v810
        %934 = vmatpush.bf16.msra.mxu0 %v809
        %935 = vmatpush.bf16.msra.mxu0 %v808
        %936 = vmatpush.bf16.msra.mxu0 %v807
        %937 = vmatpush.bf16.msra.mxu0 %v806
        %938 = vmatpush.bf16.msra.mxu0 %v805
        %939 = vmatpush.bf16.msra.mxu0 %v804
        %940 = vmatmul.bf16.gmra.mxu0 %v352
        %v941 = vpop.f32.mrf.mxu0
        %v942 = vadd.f32 %v546, %v941
        %v943 = vpop.f32.mrf.mxu0
        %v944 = vadd.f32 %v546, %v943
        %945 = vmatmul.bf16.gmra.mxu0 %v360
        %v946 = vpop.f32.mrf.mxu0
        %v947 = vadd.f32 %v546, %v946
        %v948 = vpop.f32.mrf.mxu0
        %v949 = vadd.f32 %v546, %v948
        %950 = vmatmul.bf16.gmra.mxu0 %v368
        %v951 = vpop.f32.mrf.mxu0
        %v952 = vadd.f32 %v546, %v951
        %v953 = vpop.f32.mrf.mxu0
        %v954 = vadd.f32 %v546, %v953
        %955 = vmatmul.bf16.gmra.mxu0 %v376
        %v956 = vpop.f32.mrf.mxu0
        %v957 = vadd.f32 %v546, %v956
        %v958 = vpop.f32.mrf.mxu0
        %v959 = vadd.f32 %v546, %v958
        %960 = vmatmul.bf16.gmra.mxu0 %v384
        %v961 = vpop.f32.mrf.mxu0
        %v962 = vadd.f32 %v546, %v961
        %v963 = vpop.f32.mrf.mxu0
        %v964 = vadd.f32 %v546, %v963
        %965 = vmatmul.bf16.gmra.mxu0 %v392
        %v966 = vpop.f32.mrf.mxu0
        %v967 = vadd.f32 %v546, %v966
        %v968 = vpop.f32.mrf.mxu0
        %v969 = vadd.f32 %v546, %v968
        %970 = vmatmul.bf16.gmra.mxu0 %v400
        %v971 = vpop.f32.mrf.mxu0
        %v972 = vadd.f32 %v546, %v971
        %v973 = vpop.f32.mrf.mxu0
        %v974 = vadd.f32 %v546, %v973
        %975 = vmatmul.bf16.gmra.mxu0 %v408
        %v976 = vpop.f32.mrf.mxu0
        %v977 = vadd.f32 %v546, %v976
        %v978 = vpop.f32.mrf.mxu0
        %v979 = vadd.f32 %v546, %v978
        %980 = vdwg.mxu0
        %981 = vmatpush.bf16.msra.mxu0 %v819
        %982 = vmatpush.bf16.msra.mxu0 %v818
        %983 = vmatpush.bf16.msra.mxu0 %v817
        %984 = vmatpush.bf16.msra.mxu0 %v816
        %985 = vmatpush.bf16.msra.mxu0 %v815
        %986 = vmatpush.bf16.msra.mxu0 %v814
        %987 = vmatpush.bf16.msra.mxu0 %v813
        %988 = vmatpush.bf16.msra.mxu0 %v812
        %989 = vmatmul.bf16.gmra.mxu0 %v353
        %v990 = vpop.f32.mrf.mxu0
        %v991 = vadd.f32 %v942, %v990
        %v992 = vpop.f32.mrf.mxu0
        %v993 = vadd.f32 %v944, %v992
        %994 = vmatmul.bf16.gmra.mxu0 %v361
        %v995 = vpop.f32.mrf.mxu0
        %v996 = vadd.f32 %v947, %v995
        %v997 = vpop.f32.mrf.mxu0
        %v998 = vadd.f32 %v949, %v997
        %999 = vmatmul.bf16.gmra.mxu0 %v369
        %v1000 = vpop.f32.mrf.mxu0
        %v1001 = vadd.f32 %v952, %v1000
        %v1002 = vpop.f32.mrf.mxu0
        %v1003 = vadd.f32 %v954, %v1002
        %1004 = vmatmul.bf16.gmra.mxu0 %v377
        %v1005 = vpop.f32.mrf.mxu0
        %v1006 = vadd.f32 %v957, %v1005
        %v1007 = vpop.f32.mrf.mxu0
        %v1008 = vadd.f32 %v959, %v1007
        %1009 = vmatmul.bf16.gmra.mxu0 %v385
        %v1010 = vpop.f32.mrf.mxu0
        %v1011 = vadd.f32 %v962, %v1010
        %v1012 = vpop.f32.mrf.mxu0
        %v1013 = vadd.f32 %v964, %v1012
        %1014 = vmatmul.bf16.gmra.mxu0 %v393
        %v1015 = vpop.f32.mrf.mxu0
        %v1016 = vadd.f32 %v967, %v1015
        %v1017 = vpop.f32.mrf.mxu0
        %v1018 = vadd.f32 %v969, %v1017
        %1019 = vmatmul.bf16.gmra.mxu0 %v401
        %v1020 = vpop.f32.mrf.mxu0
        %v1021 = vadd.f32 %v972, %v1020
        %v1022 = vpop.f32.mrf.mxu0
        %v1023 = vadd.f32 %v974, %v1022
        %1024 = vmatmul.bf16.gmra.mxu0 %v409
        %v1025 = vpop.f32.mrf.mxu0
        %v1026 = vadd.f32 %v977, %v1025
        %v1027 = vpop.f32.mrf.mxu0
        %v1028 = vadd.f32 %v979, %v1027
        %1029 = vdwg.mxu0
        %1030 = vmatpush.bf16.msra.mxu0 %v827
        %1031 = vmatpush.bf16.msra.mxu0 %v826
        %1032 = vmatpush.bf16.msra.mxu0 %v825
        %1033 = vmatpush.bf16.msra.mxu0 %v824
        %1034 = vmatpush.bf16.msra.mxu0 %v823
        %1035 = vmatpush.bf16.msra.mxu0 %v822
        %1036 = vmatpush.bf16.msra.mxu0 %v821
        %1037 = vmatpush.bf16.msra.mxu0 %v820
        %1038 = vmatmul.bf16.gmra.mxu0 %v354
        %v1039 = vpop.f32.mrf.mxu0
        %v1040 = vadd.f32 %v991, %v1039
        %v1041 = vpop.f32.mrf.mxu0
        %v1042 = vadd.f32 %v993, %v1041
        %1043 = vmatmul.bf16.gmra.mxu0 %v362
        %v1044 = vpop.f32.mrf.mxu0
        %v1045 = vadd.f32 %v996, %v1044
        %v1046 = vpop.f32.mrf.mxu0
        %v1047 = vadd.f32 %v998, %v1046
        %1048 = vmatmul.bf16.gmra.mxu0 %v370
        %v1049 = vpop.f32.mrf.mxu0
        %v1050 = vadd.f32 %v1001, %v1049
        %v1051 = vpop.f32.mrf.mxu0
        %v1052 = vadd.f32 %v1003, %v1051
        %1053 = vmatmul.bf16.gmra.mxu0 %v378
        %v1054 = vpop.f32.mrf.mxu0
        %v1055 = vadd.f32 %v1006, %v1054
        %v1056 = vpop.f32.mrf.mxu0
        %v1057 = vadd.f32 %v1008, %v1056
        %1058 = vmatmul.bf16.gmra.mxu0 %v386
        %v1059 = vpop.f32.mrf.mxu0
        %v1060 = vadd.f32 %v1011, %v1059
        %v1061 = vpop.f32.mrf.mxu0
        %v1062 = vadd.f32 %v1013, %v1061
        %1063 = vmatmul.bf16.gmra.mxu0 %v394
        %v1064 = vpop.f32.mrf.mxu0
        %v1065 = vadd.f32 %v1016, %v1064
        %v1066 = vpop.f32.mrf.mxu0
        %v1067 = vadd.f32 %v1018, %v1066
        %1068 = vmatmul.bf16.gmra.mxu0 %v402
        %v1069 = vpop.f32.mrf.mxu0
        %v1070 = vadd.f32 %v1021, %v1069
        %v1071 = vpop.f32.mrf.mxu0
        %v1072 = vadd.f32 %v1023, %v1071
        %1073 = vmatmul.bf16.gmra.mxu0 %v410
        %v1074 = vpop.f32.mrf.mxu0
        %v1075 = vadd.f32 %v1026, %v1074
        %v1076 = vpop.f32.mrf.mxu0
        %v1077 = vadd.f32 %v1028, %v1076
        %1078 = vdwg.mxu0
        %1079 = vmatpush.bf16.msra.mxu0 %v835
        %1080 = vmatpush.bf16.msra.mxu0 %v834
        %1081 = vmatpush.bf16.msra.mxu0 %v833
        %1082 = vmatpush.bf16.msra.mxu0 %v832
        %1083 = vmatpush.bf16.msra.mxu0 %v831
        %1084 = vmatpush.bf16.msra.mxu0 %v830
        %1085 = vmatpush.bf16.msra.mxu0 %v829
        %1086 = vmatpush.bf16.msra.mxu0 %v828
        %1087 = vmatmul.bf16.gmra.mxu0 %v355
        %v1088 = vpop.f32.mrf.mxu0
        %v1089 = vadd.f32 %v1040, %v1088
        %v1090 = vpop.f32.mrf.mxu0
        %v1091 = vadd.f32 %v1042, %v1090
        %1092 = vmatmul.bf16.gmra.mxu0 %v363
        %v1093 = vpop.f32.mrf.mxu0
        %v1094 = vadd.f32 %v1045, %v1093
        %v1095 = vpop.f32.mrf.mxu0
        %v1096 = vadd.f32 %v1047, %v1095
        %1097 = vmatmul.bf16.gmra.mxu0 %v371
        %v1098 = vpop.f32.mrf.mxu0
        %v1099 = vadd.f32 %v1050, %v1098
        %v1100 = vpop.f32.mrf.mxu0
        %v1101 = vadd.f32 %v1052, %v1100
        %1102 = vmatmul.bf16.gmra.mxu0 %v379
        %v1103 = vpop.f32.mrf.mxu0
        %v1104 = vadd.f32 %v1055, %v1103
        %v1105 = vpop.f32.mrf.mxu0
        %v1106 = vadd.f32 %v1057, %v1105
        %1107 = vmatmul.bf16.gmra.mxu0 %v387
        %v1108 = vpop.f32.mrf.mxu0
        %v1109 = vadd.f32 %v1060, %v1108
        %v1110 = vpop.f32.mrf.mxu0
        %v1111 = vadd.f32 %v1062, %v1110
        %1112 = vmatmul.bf16.gmra.mxu0 %v395
        %v1113 = vpop.f32.mrf.mxu0
        %v1114 = vadd.f32 %v1065, %v1113
        %v1115 = vpop.f32.mrf.mxu0
        %v1116 = vadd.f32 %v1067, %v1115
        %1117 = vmatmul.bf16.gmra.mxu0 %v403
        %v1118 = vpop.f32.mrf.mxu0
        %v1119 = vadd.f32 %v1070, %v1118
        %v1120 = vpop.f32.mrf.mxu0
        %v1121 = vadd.f32 %v1072, %v1120
        %1122 = vmatmul.bf16.gmra.mxu0 %v411
        %v1123 = vpop.f32.mrf.mxu0
        %v1124 = vadd.f32 %v1075, %v1123
        %v1125 = vpop.f32.mrf.mxu0
        %v1126 = vadd.f32 %v1077, %v1125
        %1127 = vdwg.mxu0
        %1128 = vmatpush.bf16.msra.mxu0 %v843
        %1129 = vmatpush.bf16.msra.mxu0 %v842
        %1130 = vmatpush.bf16.msra.mxu0 %v841
        %1131 = vmatpush.bf16.msra.mxu0 %v840
        %1132 = vmatpush.bf16.msra.mxu0 %v839
        %1133 = vmatpush.bf16.msra.mxu0 %v838
        %1134 = vmatpush.bf16.msra.mxu0 %v837
        %1135 = vmatpush.bf16.msra.mxu0 %v836
        %1136 = vmatmul.bf16.gmra.mxu0 %v356
        %v1137 = vpop.f32.mrf.mxu0
        %v1138 = vadd.f32 %v1089, %v1137
        %v1139 = vpop.f32.mrf.mxu0
        %v1140 = vadd.f32 %v1091, %v1139
        %1141 = vmatmul.bf16.gmra.mxu0 %v364
        %v1142 = vpop.f32.mrf.mxu0
        %v1143 = vadd.f32 %v1094, %v1142
        %v1144 = vpop.f32.mrf.mxu0
        %v1145 = vadd.f32 %v1096, %v1144
        %1146 = vmatmul.bf16.gmra.mxu0 %v372
        %v1147 = vpop.f32.mrf.mxu0
        %v1148 = vadd.f32 %v1099, %v1147
        %v1149 = vpop.f32.mrf.mxu0
        %v1150 = vadd.f32 %v1101, %v1149
        %1151 = vmatmul.bf16.gmra.mxu0 %v380
        %v1152 = vpop.f32.mrf.mxu0
        %v1153 = vadd.f32 %v1104, %v1152
        %v1154 = vpop.f32.mrf.mxu0
        %v1155 = vadd.f32 %v1106, %v1154
        %1156 = vmatmul.bf16.gmra.mxu0 %v388
        %v1157 = vpop.f32.mrf.mxu0
        %v1158 = vadd.f32 %v1109, %v1157
        %v1159 = vpop.f32.mrf.mxu0
        %v1160 = vadd.f32 %v1111, %v1159
        %1161 = vmatmul.bf16.gmra.mxu0 %v396
        %v1162 = vpop.f32.mrf.mxu0
        %v1163 = vadd.f32 %v1114, %v1162
        %v1164 = vpop.f32.mrf.mxu0
        %v1165 = vadd.f32 %v1116, %v1164
        %1166 = vmatmul.bf16.gmra.mxu0 %v404
        %v1167 = vpop.f32.mrf.mxu0
        %v1168 = vadd.f32 %v1119, %v1167
        %v1169 = vpop.f32.mrf.mxu0
        %v1170 = vadd.f32 %v1121, %v1169
        %1171 = vmatmul.bf16.gmra.mxu0 %v412
        %v1172 = vpop.f32.mrf.mxu0
        %v1173 = vadd.f32 %v1124, %v1172
        %v1174 = vpop.f32.mrf.mxu0
        %v1175 = vadd.f32 %v1126, %v1174
        %1176 = vdwg.mxu0
        %1177 = vmatpush.bf16.msra.mxu0 %v851
        %1178 = vmatpush.bf16.msra.mxu0 %v850
        %1179 = vmatpush.bf16.msra.mxu0 %v849
        %1180 = vmatpush.bf16.msra.mxu0 %v848
        %1181 = vmatpush.bf16.msra.mxu0 %v847
        %1182 = vmatpush.bf16.msra.mxu0 %v846
        %1183 = vmatpush.bf16.msra.mxu0 %v845
        %1184 = vmatpush.bf16.msra.mxu0 %v844
        %1185 = vmatmul.bf16.gmra.mxu0 %v357
        %v1186 = vpop.f32.mrf.mxu0
        %v1187 = vadd.f32 %v1138, %v1186
        %v1188 = vpop.f32.mrf.mxu0
        %v1189 = vadd.f32 %v1140, %v1188
        %1190 = vmatmul.bf16.gmra.mxu0 %v365
        %v1191 = vpop.f32.mrf.mxu0
        %v1192 = vadd.f32 %v1143, %v1191
        %v1193 = vpop.f32.mrf.mxu0
        %v1194 = vadd.f32 %v1145, %v1193
        %1195 = vmatmul.bf16.gmra.mxu0 %v373
        %v1196 = vpop.f32.mrf.mxu0
        %v1197 = vadd.f32 %v1148, %v1196
        %v1198 = vpop.f32.mrf.mxu0
        %v1199 = vadd.f32 %v1150, %v1198
        %1200 = vmatmul.bf16.gmra.mxu0 %v381
        %v1201 = vpop.f32.mrf.mxu0
        %v1202 = vadd.f32 %v1153, %v1201
        %v1203 = vpop.f32.mrf.mxu0
        %v1204 = vadd.f32 %v1155, %v1203
        %1205 = vmatmul.bf16.gmra.mxu0 %v389
        %v1206 = vpop.f32.mrf.mxu0
        %v1207 = vadd.f32 %v1158, %v1206
        %v1208 = vpop.f32.mrf.mxu0
        %v1209 = vadd.f32 %v1160, %v1208
        %1210 = vmatmul.bf16.gmra.mxu0 %v397
        %v1211 = vpop.f32.mrf.mxu0
        %v1212 = vadd.f32 %v1163, %v1211
        %v1213 = vpop.f32.mrf.mxu0
        %v1214 = vadd.f32 %v1165, %v1213
        %1215 = vmatmul.bf16.gmra.mxu0 %v405
        %v1216 = vpop.f32.mrf.mxu0
        %v1217 = vadd.f32 %v1168, %v1216
        %v1218 = vpop.f32.mrf.mxu0
        %v1219 = vadd.f32 %v1170, %v1218
        %1220 = vmatmul.bf16.gmra.mxu0 %v413
        %v1221 = vpop.f32.mrf.mxu0
        %v1222 = vadd.f32 %v1173, %v1221
        %v1223 = vpop.f32.mrf.mxu0
        %v1224 = vadd.f32 %v1175, %v1223
        %1225 = vdwg.mxu0
        %1226 = vmatpush.bf16.msra.mxu0 %v859
        %1227 = vmatpush.bf16.msra.mxu0 %v858
        %1228 = vmatpush.bf16.msra.mxu0 %v857
        %1229 = vmatpush.bf16.msra.mxu0 %v856
        %1230 = vmatpush.bf16.msra.mxu0 %v855
        %1231 = vmatpush.bf16.msra.mxu0 %v854
        %1232 = vmatpush.bf16.msra.mxu0 %v853
        %1233 = vmatpush.bf16.msra.mxu0 %v852
        %1234 = vmatmul.bf16.gmra.mxu0 %v358
        %v1235 = vpop.f32.mrf.mxu0
        %v1236 = vadd.f32 %v1187, %v1235
        %v1237 = vpop.f32.mrf.mxu0
        %v1238 = vadd.f32 %v1189, %v1237
        %1239 = vmatmul.bf16.gmra.mxu0 %v366
        %v1240 = vpop.f32.mrf.mxu0
        %v1241 = vadd.f32 %v1192, %v1240
        %v1242 = vpop.f32.mrf.mxu0
        %v1243 = vadd.f32 %v1194, %v1242
        %1244 = vmatmul.bf16.gmra.mxu0 %v374
        %v1245 = vpop.f32.mrf.mxu0
        %v1246 = vadd.f32 %v1197, %v1245
        %v1247 = vpop.f32.mrf.mxu0
        %v1248 = vadd.f32 %v1199, %v1247
        %1249 = vmatmul.bf16.gmra.mxu0 %v382
        %v1250 = vpop.f32.mrf.mxu0
        %v1251 = vadd.f32 %v1202, %v1250
        %v1252 = vpop.f32.mrf.mxu0
        %v1253 = vadd.f32 %v1204, %v1252
        %1254 = vmatmul.bf16.gmra.mxu0 %v390
        %v1255 = vpop.f32.mrf.mxu0
        %v1256 = vadd.f32 %v1207, %v1255
        %v1257 = vpop.f32.mrf.mxu0
        %v1258 = vadd.f32 %v1209, %v1257
        %1259 = vmatmul.bf16.gmra.mxu0 %v398
        %v1260 = vpop.f32.mrf.mxu0
        %v1261 = vadd.f32 %v1212, %v1260
        %v1262 = vpop.f32.mrf.mxu0
        %v1263 = vadd.f32 %v1214, %v1262
        %1264 = vmatmul.bf16.gmra.mxu0 %v406
        %v1265 = vpop.f32.mrf.mxu0
        %v1266 = vadd.f32 %v1217, %v1265
        %v1267 = vpop.f32.mrf.mxu0
        %v1268 = vadd.f32 %v1219, %v1267
        %1269 = vmatmul.bf16.gmra.mxu0 %v414
        %v1270 = vpop.f32.mrf.mxu0
        %v1271 = vadd.f32 %v1222, %v1270
        %v1272 = vpop.f32.mrf.mxu0
        %v1273 = vadd.f32 %v1224, %v1272
        %1274 = vdwg.mxu0
        %1275 = vmatpush.bf16.msra.mxu0 %v867
        %1276 = vmatpush.bf16.msra.mxu0 %v866
        %1277 = vmatpush.bf16.msra.mxu0 %v865
        %1278 = vmatpush.bf16.msra.mxu0 %v864
        %1279 = vmatpush.bf16.msra.mxu0 %v863
        %1280 = vmatpush.bf16.msra.mxu0 %v862
        %1281 = vmatpush.bf16.msra.mxu0 %v861
        %1282 = vmatpush.bf16.msra.mxu0 %v860
        %1283 = vmatmul.bf16.gmra.mxu0 %v359
        %v1284 = vpop.f32.mrf.mxu0
        %v1285 = vadd.f32 %v1236, %v1284
        %v1286 = vpop.f32.mrf.mxu0
        %v1287 = vadd.f32 %v1238, %v1286
        %1288 = vmatmul.bf16.gmra.mxu0 %v367
        %v1289 = vpop.f32.mrf.mxu0
        %v1290 = vadd.f32 %v1241, %v1289
        %v1291 = vpop.f32.mrf.mxu0
        %v1292 = vadd.f32 %v1243, %v1291
        %1293 = vmatmul.bf16.gmra.mxu0 %v375
        %v1294 = vpop.f32.mrf.mxu0
        %v1295 = vadd.f32 %v1246, %v1294
        %v1296 = vpop.f32.mrf.mxu0
        %v1297 = vadd.f32 %v1248, %v1296
        %1298 = vmatmul.bf16.gmra.mxu0 %v383
        %v1299 = vpop.f32.mrf.mxu0
        %v1300 = vadd.f32 %v1251, %v1299
        %v1301 = vpop.f32.mrf.mxu0
        %v1302 = vadd.f32 %v1253, %v1301
        %1303 = vmatmul.bf16.gmra.mxu0 %v391
        %v1304 = vpop.f32.mrf.mxu0
        %v1305 = vadd.f32 %v1256, %v1304
        %v1306 = vpop.f32.mrf.mxu0
        %v1307 = vadd.f32 %v1258, %v1306
        %1308 = vmatmul.bf16.gmra.mxu0 %v399
        %v1309 = vpop.f32.mrf.mxu0
        %v1310 = vadd.f32 %v1261, %v1309
        %v1311 = vpop.f32.mrf.mxu0
        %v1312 = vadd.f32 %v1263, %v1311
        %1313 = vmatmul.bf16.gmra.mxu0 %v407
        %v1314 = vpop.f32.mrf.mxu0
        %v1315 = vadd.f32 %v1266, %v1314
        %v1316 = vpop.f32.mrf.mxu0
        %v1317 = vadd.f32 %v1268, %v1316
        %1318 = vmatmul.bf16.gmra.mxu0 %v415
        %v1319 = vpop.f32.mrf.mxu0
        %v1320 = vadd.f32 %v1271, %v1319
        %v1321 = vpop.f32.mrf.mxu0
        %v1322 = vadd.f32 %v1273, %v1321
        %1323 = vdwg.mxu0
        %1324 = vst [vmem:[%s212] sm:$0xff] %v1285
        %1325 = vst [vmem:[%s212 + $0x8] sm:$0xff] %v1287
        %1326 = vst [vmem:[%s212 + $0x10] sm:$0xff] %v1290
        %1327 = vst [vmem:[%s212 + $0x18] sm:$0xff] %v1292
        %1328 = vst [vmem:[%s212 + $0x20] sm:$0xff] %v1295
        %1329 = vst [vmem:[%s212 + $0x28] sm:$0xff] %v1297
        %1330 = vst [vmem:[%s212 + $0x30] sm:$0xff] %v1300
        %1331 = vst [vmem:[%s212 + $0x38] sm:$0xff] %v1302
        %1332 = vst [vmem:[%s212 + $0x40] sm:$0xff] %v1305
        %1333 = vst [vmem:[%s212 + $0x48] sm:$0xff] %v1307
        %1334 = vst [vmem:[%s212 + $0x50] sm:$0xff] %v1310
        %1335 = vst [vmem:[%s212 + $0x58] sm:$0xff] %v1312
        %1336 = vst [vmem:[%s212 + $0x60] sm:$0xff] %v1315
        %1337 = vst [vmem:[%s212 + $0x68] sm:$0xff] %v1317
        %1338 = vst [vmem:[%s212 + $0x70] sm:$0xff] %v1320
        %1339 = vst [vmem:[%s212 + $0x78] sm:$0xff] %v1322
        %s1340 = sand.u32 %s94, 1
        %s1341 = sand.u32 %s94, 1
        %s1342 = smul.addr %s1341, 128
        %s1343 = scalar_lea.vmem [#allocation6], %s1342
        // Predicated region
        $region41: #{two_headed_forward_fused.1} parent=31 // pred_check
          %p1344 = pneg %p104
        $region42: #{two_headed_forward_fused.1} parent=31 // pred_check_branch
          %1346 = sbr.rel (%p1344) target = $region44
        $region43: #{two_headed_forward_fused.1} parent=31 // pred_region
          %s1347 = smul.u32 16, %s18
          %s1348 = ssub.s32 25, %s1347
          %p1349 = scmp.lt.s32.totalorder %s1348, 16
          %s1350 = scalar_select %p1349, %s1348, 16
          %s1351 = smul.u32 8, %s1350
          %p1352 = scmp.ne.s32.totalorder 0, %s1351
          %s1353 = smul.addr %s1347, 8
          %s1354 = scalar_lea.vmem %s3, %s1353
          // Predicated region
          $region45: #{two_headed_forward_fused.1} parent=43 // pred_check
            %p1355 = pneg %p1352
          $region46: #{two_headed_forward_fused.1} parent=43 // pred_check_branch
            %1357 = sbr.rel (%p1355) target = $region48
          $region47: #{two_headed_forward_fused.1} parent=43 // pred_region
            // Predicated region
            $region49: #{two_headed_forward_fused.1} parent=47 // pred_check
              _
            $region50: #{two_headed_forward_fused.1} parent=47 // pred_check_branch
              %1359 = sbr.rel (0) target = $region52
            $region51: #{two_headed_forward_fused.1} parent=47 // pred_region
              // Predicated region
              $region71: #{two_headed_forward_fused.1} parent=51 // pred_check
                _
              $region72: #{two_headed_forward_fused.1} parent=51 // pred_check_branch
                %1439 = sbr.rel (0) target = $region74
              $region73: #{two_headed_forward_fused.1} parent=51 // pred_region
                %s1440 = sshrl.u32 %s1350, 4
                // While loop
                $region75: #{two_headed_forward_fused.1} parent=73 // loop_pre_header
                  _
                $region76: #{two_headed_forward_fused.1} parent=73 // loop_header
                  %s1442 = sphi 0, %s1444
                  %p1443 = scmp.ge.s32.totalorder %s1442, %s1440
                  %s1447 = sphi 0, %s1484
                  %s1448 = sphi %s1343, %s1487
                  %s1449 = sphi %s1354, %s1488
                $region77: #{two_headed_forward_fused.1} parent=73 // loop_header_branch
                  %1446 = sbr.rel (%p1443) target = $region81
                $region78: #{two_headed_forward_fused.1} parent=73 // loop_body
                  %v1450 = vld [vmem:[%s1448] sm:$0xff]
                  %1451 = vst [vmem:[%s1449] sm:$0xff] %v1450
                  %v1452 = vld [vmem:[%s1448 + $0x8] sm:$0xff]
                  %1453 = vst [vmem:[%s1449 + $0x8] sm:$0xff] %v1452
                  %v1454 = vld [vmem:[%s1448 + $0x10] sm:$0xff]
                  %1455 = vst [vmem:[%s1449 + $0x10] sm:$0xff] %v1454
                  %v1456 = vld [vmem:[%s1448 + $0x18] sm:$0xff]
                  %1457 = vst [vmem:[%s1449 + $0x18] sm:$0xff] %v1456
                  %v1458 = vld [vmem:[%s1448 + $0x20] sm:$0xff]
                  %1459 = vst [vmem:[%s1449 + $0x20] sm:$0xff] %v1458
                  %v1460 = vld [vmem:[%s1448 + $0x28] sm:$0xff]
                  %1461 = vst [vmem:[%s1449 + $0x28] sm:$0xff] %v1460
                  %v1462 = vld [vmem:[%s1448 + $0x30] sm:$0xff]
                  %1463 = vst [vmem:[%s1449 + $0x30] sm:$0xff] %v1462
                  %v1464 = vld [vmem:[%s1448 + $0x38] sm:$0xff]
                  %1465 = vst [vmem:[%s1449 + $0x38] sm:$0xff] %v1464
                  %v1466 = vld [vmem:[%s1448 + $0x40] sm:$0xff]
                  %1467 = vst [vmem:[%s1449 + $0x40] sm:$0xff] %v1466
                  %v1468 = vld [vmem:[%s1448 + $0x48] sm:$0xff]
                  %1469 = vst [vmem:[%s1449 + $0x48] sm:$0xff] %v1468
                  %v1470 = vld [vmem:[%s1448 + $0x50] sm:$0xff]
                  %1471 = vst [vmem:[%s1449 + $0x50] sm:$0xff] %v1470
                  %v1472 = vld [vmem:[%s1448 + $0x58] sm:$0xff]
                  %1473 = vst [vmem:[%s1449 + $0x58] sm:$0xff] %v1472
                  %v1474 = vld [vmem:[%s1448 + $0x60] sm:$0xff]
                  %1475 = vst [vmem:[%s1449 + $0x60] sm:$0xff] %v1474
                  %v1476 = vld [vmem:[%s1448 + $0x68] sm:$0xff]
                  %1477 = vst [vmem:[%s1449 + $0x68] sm:$0xff] %v1476
                  %v1478 = vld [vmem:[%s1448 + $0x70] sm:$0xff]
                  %1479 = vst [vmem:[%s1449 + $0x70] sm:$0xff] %v1478
                  %v1480 = vld [vmem:[%s1448 + $0x78] sm:$0xff]
                  %1481 = vst [vmem:[%s1449 + $0x78] sm:$0xff] %v1480
                  %s1482 = sadd.s32 1, %s1447
                  %p1483 = scmp.ge.s32.totalorder %s1482, %s1440
                  %s1484 = scalar_select %p1483, 0, %s1482
                  %s1485 = smul.u32 %s1484, 128
                  %s1486 = smul.u32 %s1484, 128
                  %s1487 = scalar_lea.vmem %s1343, %s1485 [#allocation6]
                  %s1488 = scalar_lea.vmem %s1354, %s1486
                $region79: #{two_headed_forward_fused.1} parent=73 // loop_footer
                  %s1444 = sadd.s32 %s1442, 1
                $region80: #{two_headed_forward_fused.1} parent=73 // loop_footer_branch
                  %1441 = sbr.rel target = $region76
                $region81: #{two_headed_forward_fused.1} parent=73 // loop_exit
                  _
                %s1489 = sshrl.u32 %s1350, 4
                %s1490 = sand.u32 %s1350, 15
                %s1491 = smul.u32 %s1489, 16
                %s1492 = smul.u32 8, %s1491
                %s1493 = scalar_lea.vmem %s1343, %s1492 [#allocation6]
                %s1494 = smul.u32 8, %s1491
                %s1495 = scalar_lea.vmem %s1354, %s1494
                // While loop
                $region82: #{two_headed_forward_fused.1} parent=73 // loop_pre_header
                  _
                $region83: #{two_headed_forward_fused.1} parent=73 // loop_header
                  %s1497 = sphi 0, %s1499
                  %p1498 = scmp.ge.s32.totalorder %s1497, %s1490
                  %s1502 = sphi 0, %s1509
                  %s1503 = sphi %s1493, %s1512
                  %s1504 = sphi %s1495, %s1513
                $region84: #{two_headed_forward_fused.1} parent=73 // loop_header_branch
                  %1501 = sbr.rel (%p1498) target = $region88
                $region85: #{two_headed_forward_fused.1} parent=73 // loop_body
                  %v1505 = vld [vmem:[%s1503] sm:$0xff]
                  %1506 = vst [vmem:[%s1504] sm:$0xff] %v1505
                  %s1507 = sadd.s32 1, %s1502
                  %p1508 = scmp.ge.s32.totalorder %s1507, %s1490
                  %s1509 = scalar_select %p1508, 0, %s1507
                  %s1510 = smul.u32 %s1509, 8
                  %s1511 = smul.u32 %s1509, 8
                  %s1512 = scalar_lea.vmem %s1493, %s1510 [#allocation6]
                  %s1513 = scalar_lea.vmem %s1495, %s1511
                $region86: #{two_headed_forward_fused.1} parent=73 // loop_footer
                  %s1499 = sadd.s32 %s1497, 1
                $region87: #{two_headed_forward_fused.1} parent=73 // loop_footer_branch
                  %1496 = sbr.rel target = $region83
                $region88: #{two_headed_forward_fused.1} parent=73 // loop_exit
                  _
              $region74: #{two_headed_forward_fused.1} parent=51 // pred_fallthru
                _
              // Predicated region
              $region89: #{two_headed_forward_fused.1} parent=51 // pred_check
                _
              $region90: #{two_headed_forward_fused.1} parent=51 // pred_check_branch
                %1515 = sbr.rel target = $region92
              $region91: #{two_headed_forward_fused.1} parent=51 // pred_region
                _
              $region92: #{two_headed_forward_fused.1} parent=51 // pred_fallthru
                _
            $region52: #{two_headed_forward_fused.1} parent=47 // pred_fallthru
              _
            // Predicated region
            $region53: #{two_headed_forward_fused.1} parent=47 // pred_check
              _
            $region54: #{two_headed_forward_fused.1} parent=47 // pred_check_branch
              %1361 = sbr.rel target = $region56
            $region55: #{two_headed_forward_fused.1} parent=47 // pred_region
              %s1363 = ssub.s32 256, 1
              %s1364 = sshrl.u32 %s1350, 4
              // While loop
              $region57: #{two_headed_forward_fused.1} parent=55 // loop_pre_header
                _
              $region58: #{two_headed_forward_fused.1} parent=55 // loop_header
                %s1366 = sphi 0, %s1368
                %p1367 = scmp.ge.s32.totalorder %s1366, %s1364
                %s1371 = sphi 0, %s1408
                %s1372 = sphi %s1343, %s1411
                %s1373 = sphi %s1354, %s1412
              $region59: #{two_headed_forward_fused.1} parent=55 // loop_header_branch
                %1370 = sbr.rel (%p1367) target = $region63
              $region60: #{two_headed_forward_fused.1} parent=55 // loop_body
                %v1374 = vld [vmem:[%s1372] sm:%s1363]
                %1375 = vst [vmem:[%s1373] sm:%s1363] %v1374
                %v1376 = vld [vmem:[%s1372 + $0x8] sm:%s1363]
                %1377 = vst [vmem:[%s1373 + $0x8] sm:%s1363] %v1376
                %v1378 = vld [vmem:[%s1372 + $0x10] sm:%s1363]
                %1379 = vst [vmem:[%s1373 + $0x10] sm:%s1363] %v1378
                %v1380 = vld [vmem:[%s1372 + $0x18] sm:%s1363]
                %1381 = vst [vmem:[%s1373 + $0x18] sm:%s1363] %v1380
                %v1382 = vld [vmem:[%s1372 + $0x20] sm:%s1363]
                %1383 = vst [vmem:[%s1373 + $0x20] sm:%s1363] %v1382
                %v1384 = vld [vmem:[%s1372 + $0x28] sm:%s1363]
                %1385 = vst [vmem:[%s1373 + $0x28] sm:%s1363] %v1384
                %v1386 = vld [vmem:[%s1372 + $0x30] sm:%s1363]
                %1387 = vst [vmem:[%s1373 + $0x30] sm:%s1363] %v1386
                %v1388 = vld [vmem:[%s1372 + $0x38] sm:%s1363]
                %1389 = vst [vmem:[%s1373 + $0x38] sm:%s1363] %v1388
                %v1390 = vld [vmem:[%s1372 + $0x40] sm:%s1363]
                %1391 = vst [vmem:[%s1373 + $0x40] sm:%s1363] %v1390
                %v1392 = vld [vmem:[%s1372 + $0x48] sm:%s1363]
                %1393 = vst [vmem:[%s1373 + $0x48] sm:%s1363] %v1392
                %v1394 = vld [vmem:[%s1372 + $0x50] sm:%s1363]
                %1395 = vst [vmem:[%s1373 + $0x50] sm:%s1363] %v1394
                %v1396 = vld [vmem:[%s1372 + $0x58] sm:%s1363]
                %1397 = vst [vmem:[%s1373 + $0x58] sm:%s1363] %v1396
                %v1398 = vld [vmem:[%s1372 + $0x60] sm:%s1363]
                %1399 = vst [vmem:[%s1373 + $0x60] sm:%s1363] %v1398
                %v1400 = vld [vmem:[%s1372 + $0x68] sm:%s1363]
                %1401 = vst [vmem:[%s1373 + $0x68] sm:%s1363] %v1400
                %v1402 = vld [vmem:[%s1372 + $0x70] sm:%s1363]
                %1403 = vst [vmem:[%s1373 + $0x70] sm:%s1363] %v1402
                %v1404 = vld [vmem:[%s1372 + $0x78] sm:%s1363]
                %1405 = vst [vmem:[%s1373 + $0x78] sm:%s1363] %v1404
                %s1406 = sadd.s32 1, %s1371
                %p1407 = scmp.ge.s32.totalorder %s1406, %s1364
                %s1408 = scalar_select %p1407, 0, %s1406
                %s1409 = smul.u32 %s1408, 128
                %s1410 = smul.u32 %s1408, 128
                %s1411 = scalar_lea.vmem %s1343, %s1409 [#allocation6]
                %s1412 = scalar_lea.vmem %s1354, %s1410
              $region61: #{two_headed_forward_fused.1} parent=55 // loop_footer
                %s1368 = sadd.s32 %s1366, 1
              $region62: #{two_headed_forward_fused.1} parent=55 // loop_footer_branch
                %1365 = sbr.rel target = $region58
              $region63: #{two_headed_forward_fused.1} parent=55 // loop_exit
                _
              %s1413 = sshrl.u32 %s1350, 4
              %s1414 = sand.u32 %s1350, 15
              %s1415 = smul.u32 %s1413, 16
              %s1416 = smul.u32 8, %s1415
              %s1417 = scalar_lea.vmem %s1343, %s1416 [#allocation6]
              %s1418 = smul.u32 8, %s1415
              %s1419 = scalar_lea.vmem %s1354, %s1418
              // While loop
              $region64: #{two_headed_forward_fused.1} parent=55 // loop_pre_header
                _
              $region65: #{two_headed_forward_fused.1} parent=55 // loop_header
                %s1421 = sphi 0, %s1423
                %p1422 = scmp.ge.s32.totalorder %s1421, %s1414
                %s1426 = sphi 0, %s1433
                %s1427 = sphi %s1417, %s1436
                %s1428 = sphi %s1419, %s1437
              $region66: #{two_headed_forward_fused.1} parent=55 // loop_header_branch
                %1425 = sbr.rel (%p1422) target = $region70
              $region67: #{two_headed_forward_fused.1} parent=55 // loop_body
                %v1429 = vld [vmem:[%s1427] sm:%s1363]
                %1430 = vst [vmem:[%s1428] sm:%s1363] %v1429
                %s1431 = sadd.s32 1, %s1426
                %p1432 = scmp.ge.s32.totalorder %s1431, %s1414
                %s1433 = scalar_select %p1432, 0, %s1431
                %s1434 = smul.u32 %s1433, 8
                %s1435 = smul.u32 %s1433, 8
                %s1436 = scalar_lea.vmem %s1417, %s1434 [#allocation6]
                %s1437 = scalar_lea.vmem %s1419, %s1435
              $region68: #{two_headed_forward_fused.1} parent=55 // loop_footer
                %s1423 = sadd.s32 %s1421, 1
              $region69: #{two_headed_forward_fused.1} parent=55 // loop_footer_branch
                %1420 = sbr.rel target = $region65
              $region70: #{two_headed_forward_fused.1} parent=55 // loop_exit
                _
            $region56: #{two_headed_forward_fused.1} parent=47 // pred_fallthru
              _
          $region48: #{two_headed_forward_fused.1} parent=43 // pred_fallthru
            _
          %1516 = vnop
        $region44: #{two_headed_forward_fused.1} parent=31 // pred_fallthru
          _
      $region32: #{two_headed_forward_fused.1} parent=5 // pred_fallthru
        _
      %p1517 = scmp.le.s32.totalorder 2, %s13
      // Predicated region
      $region93: #{two_headed_forward_fused.1} parent=5 // pred_check
        %p1518 = pneg %p1517
      $region94: #{two_headed_forward_fused.1} parent=5 // pred_check_branch
        %1520 = sbr.rel (%p1518) target = $region96
      $region95: #{two_headed_forward_fused.1} parent=5 // pred_region
        %s1521 = ssub.s32 %s13, 2
        // Predicated region
        $region97: #{two_headed_forward_fused.1} parent=95 // pred_check
          %p1522 = pneg %p110
        $region98: #{two_headed_forward_fused.1} parent=95 // pred_check_branch
          %1524 = sbr.rel (%p1522) target = $region100
        $region99: #{two_headed_forward_fused.1} parent=95 // pred_region
          %s1525 = sand.u32 %s95, 1
          %s1526 = sand.u32 %s95, 1
          %s1527 = smul.addr %s1526, 128
          %s1528 = scalar_lea.vmem [#allocation6], %s1527
        $region100: #{two_headed_forward_fused.1} parent=95 // pred_fallthru
          _
      $region96: #{two_headed_forward_fused.1} parent=5 // pred_fallthru
        _
    $region6: #{two_headed_forward_fused.1} parent=1 // loop_footer
      %s17 = sadd.s32 1, %s13
    $region7: #{two_headed_forward_fused.1} parent=1 // loop_footer_branch
      %12 = sbr.rel target = $region3
    $region8: #{two_headed_forward_fused.1} parent=1 // loop_exit
      _
    %1529 = vsyncpa [#allocation3], 1
    %s1530 = scalar_lea.sflag [#allocation3], 1
    %1531 = vsyncpa %s1530, 1
    %1532 = vsyncpa [#allocation5], 1

</llo_original>
